<compile_context>
chip_gen: v5e
topology: v5e:2x2
jax: 0.10.0
libtpu: 0.0.40
codegen_flags: <defaults>
</compile_context>

<pallas_src>
import math

import jax
import jax.numpy as jnp
from jax.experimental import pallas as pl
from jax.experimental.pallas import tpu as pltpu

# ---- model hyperparameters (small, consistent with the module) -------------
EMBED_DIM = 32
NUM_HEADS = 4
FF_DIM = 64
HEAD_DIM = EMBED_DIM // NUM_HEADS
SEQ = 8
BATCH = 2
NUM_TOKENS = SEQ * BATCH
LN_EPS = 1e-5


def _layer_norm(x, gamma, beta, eps=LN_EPS):
    mu = jnp.mean(x, axis=-1, keepdims=True)
    var = jnp.mean((x - mu) ** 2, axis=-1, keepdims=True)
    return (x - mu) * jax.lax.rsqrt(var + eps) * gamma + beta


def transformer_block_kernel(
    x_ref,      # (NT, E)      flattened tokens (seq-major, batch interleaved)
    wq_ref,     # (H, E, Dh)   pre-transposed, pre-scaled by 1/sqrt(Dh)
    wk_ref,     # (H, E, Dh)   pre-transposed
    wv_ref,     # (H, E, Dh)   pre-transposed
    bq_ref,     # (H, 1, Dh)   pre-scaled
    bk_ref,     # (H, 1, Dh)
    bv_ref,     # (H, 1, Dh)
    wo_ref,     # (H, Dh, E)   out_proj.weight.T split per head
    bo_ref,     # (1, E)
    w1_ref,     # (E, F)       ffn[0].weight.T
    b1_ref,     # (1, F)
    w2_ref,     # (F, E)       ffn[2].weight.T
    b2_ref,     # (1, E)
    g1_ref,     # (1, E)
    be1_ref,    # (1, E)
    g2_ref,     # (1, E)
    be2_ref,    # (1, E)
    o_ref,      # (NT, E)
):
    x = x_ref[...]                                              # (16, 32) f32

    # Static block mask: a token only attends within its own batch element.
    # Token row r corresponds to batch index (r % BATCH).
    row_b = jax.lax.broadcasted_iota(jnp.int32, (NUM_TOKENS, NUM_TOKENS), 0) % BATCH
    col_b = jax.lax.broadcasted_iota(jnp.int32, (NUM_TOKENS, NUM_TOKENS), 1) % BATCH
    same_batch = row_b == col_b

    attn = jnp.zeros((NUM_TOKENS, EMBED_DIM), jnp.float32)
    for h in range(NUM_HEADS):      # static, unrolled; only leading-dim weight indexing
        qh = jnp.dot(x, wq_ref[h], preferred_element_type=jnp.float32) + bq_ref[h]
        kh = jnp.dot(x, wk_ref[h], preferred_element_type=jnp.float32) + bk_ref[h]
        vh = jnp.dot(x, wv_ref[h], preferred_element_type=jnp.float32) + bv_ref[h]

        # scores = q @ k^T via contraction on the last dim of both operands
        # (no materialized activation transpose).
        s = jax.lax.dot_general(qh, kh, (((1,), (1,)), ((), ())),
                                preferred_element_type=jnp.float32)   # (16, 16)
        s = jnp.where(same_batch, s, jnp.float32(-1e30))
        s = s - jnp.max(s, axis=-1, keepdims=True)
        p = jnp.exp(s)
        denom = jnp.sum(p, axis=-1, keepdims=True)
        p = p * pl.reciprocal(denom, approx=False)                    # EUP path

        ah = jnp.dot(p, vh, preferred_element_type=jnp.float32)       # (16, Dh)
        # Per-head output projection accumulated in place: no head concatenate.
        attn = attn + jnp.dot(ah, wo_ref[h], preferred_element_type=jnp.float32)

    attn = attn + bo_ref[...]

    # ---- residual + LayerNorm 1 --------------------------------------------
    x1 = _layer_norm(x + attn, g1_ref[...], be1_ref[...])

    # ---- FFN: Linear -> ReLU -> Linear --------------------------------------
    h1 = jnp.dot(x1, w1_ref[...], preferred_element_type=jnp.float32) + b1_ref[...]
    h1 = jnp.maximum(h1, 0.0)
    ff = jnp.dot(h1, w2_ref[...], preferred_element_type=jnp.float32) + b2_ref[...]

    # ---- residual + LayerNorm 2 --------------------------------------------
    o_ref[...] = _layer_norm(x1 + ff, g2_ref[...], be2_ref[...])


def _prepare_kernel_params(params):
    """One-time weight transforms: transpose, per-head split, scale folding."""
    E, H, Dh = EMBED_DIM, NUM_HEADS, HEAD_DIM
    scale = 1.0 / math.sqrt(Dh)
    w_in = params["w_in"]                      # (3E, E), rows = [Wq; Wk; Wv]
    b_in = params["b_in"][0]                   # (3E,)

    def per_head(w):                           # (E_out, E_in) -> (H, E_in, Dh) == W.T per head
        return jnp.transpose(jnp.reshape(w.T, (E, H, Dh)), (1, 0, 2))

    wq_h = per_head(w_in[0:E]) * scale         # fold 1/sqrt(Dh) into Q projection
    wk_h = per_head(w_in[E:2 * E])
    wv_h = per_head(w_in[2 * E:])
    bq_h = (b_in[0:E] * scale).reshape(H, 1, Dh)
    bk_h = b_in[E:2 * E].reshape(H, 1, Dh)
    bv_h = b_in[2 * E:].reshape(H, 1, Dh)
    wo_h = params["w_out"].T.reshape(H, Dh, E)

    return (
        wq_h, wk_h, wv_h, bq_h, bk_h, bv_h, wo_h, params["b_out"],
        params["w1"].T, params["b1"], params["w2"].T, params["b2"],
        params["g1"], params["be1"], params["g2"], params["be2"],
    )


def transformer_block(x_sne, params):
    """x_sne: (S, N, E) float32 (PyTorch seq-first convention).  Returns (S, N, E)."""
    S, N, E = x_sne.shape
    x_tok = x_sne.reshape(S * N, E)            # flatten tokens; no transpose needed
    kparams = _prepare_kernel_params(params)

    vmem = pl.BlockSpec(memory_space=pltpu.MemorySpace.VMEM)
    out = pl.pallas_call(
        transformer_block_kernel,
        out_shape=jax.ShapeDtypeStruct((S * N, E), jnp.float32),
        in_specs=[vmem] * (1 + len(kparams)),
        out_specs=vmem,
    )(x_tok, *kparams)

    return out.reshape(S, N, E)


# ---- pure-JAX reference (for a correctness check) ---------------------------
def reference_block(x_sne, params):
    S, N, E = x_sne.shape
    scale = 1.0 / math.sqrt(HEAD_DIM)
    w_in, b_in = params["w_in"], params["b_in"][0]
    qkv = jnp.einsum("sne,fe->snf", x_sne, w_in) + b_in
    q, k, v = qkv[..., :E], qkv[..., E:2 * E], qkv[..., 2 * E:]

    def split(a):  # (S,N,E) -> (N,H,S,Dh)
        return a.reshape(S, N, NUM_HEADS, HEAD_DIM).transpose(1, 2, 0, 3)

    qh, kh, vh = split(q) * scale, split(k), split(v)
    s = jnp.einsum("nhqd,nhkd->nhqk", qh, kh)
    p = jax.nn.softmax(s, axis=-1)
    a = jnp.einsum("nhqk,nhkd->nhqd", p, vh)
    a = a.transpose(2, 0, 1, 3).reshape(S, N, E)
    a = jnp.einsum("sne,fe->snf", a, params["w_out"]) + params["b_out"][0]
    x1 = _layer_norm(x_sne + a, params["g1"][0], params["be1"][0])
    h1 = jax.nn.relu(jnp.einsum("sne,fe->snf", x1, params["w1"]) + params["b1"][0])
    ff = jnp.einsum("snf,ef->sne", h1, params["w2"]) + params["b2"][0]
    return _layer_norm(x1 + ff, params["g2"][0], params["be2"][0])


def make_params(key):
    ks = jax.random.split(key, 8)
    scale = 0.05
    return {
        "w_in":  scale * jax.random.normal(ks[0], (3 * EMBED_DIM, EMBED_DIM), jnp.float32),
        "b_in":  scale * jax.random.normal(ks[1], (1, 3 * EMBED_DIM), jnp.float32),
        "w_out": scale * jax.random.normal(ks[2], (EMBED_DIM, EMBED_DIM), jnp.float32),
        "b_out": scale * jax.random.normal(ks[3], (1, EMBED_DIM), jnp.float32),
        "w1":    scale * jax.random.normal(ks[4], (FF_DIM, EMBED_DIM), jnp.float32),
        "b1":    scale * jax.random.normal(ks[5], (1, FF_DIM), jnp.float32),
        "w2":    scale * jax.random.normal(ks[6], (EMBED_DIM, FF_DIM), jnp.float32),
        "b2":    scale * jax.random.normal(ks[7], (1, EMBED_DIM), jnp.float32),
        "g1":  jnp.ones((1, EMBED_DIM), jnp.float32),
        "be1": jnp.zeros((1, EMBED_DIM), jnp.float32),
        "g2":  jnp.ones((1, EMBED_DIM), jnp.float32),
        "be2": jnp.zeros((1, EMBED_DIM), jnp.float32),
    }


if __name__ == "__main__":
    key = jax.random.PRNGKey(0)
    k_x, k_p = jax.random.split(key)
    x = jax.random.normal(k_x, (SEQ, BATCH, EMBED_DIM), jnp.float32)  # (S, N, E)
    params = make_params(k_p)

    out = jax.block_until_ready(transformer_block(x, params))
    ref = jax.block_until_ready(reference_block(x, params))

    assert out.shape == (SEQ, BATCH, EMBED_DIM)
    assert jnp.max(jnp.abs(out - ref)) < 1e-4, "mismatch vs pure-JAX reference"

    print("KERNEL_OK")
</pallas_src>

<mosaic_0001>
module attributes {stable_mosaic.version = 11 : i64} {
  func.func @transformer_block_kernel(%arg0: memref<16x32xf32, #tpu.memory_space<vmem>>, %arg1: memref<4x32x8xf32, #tpu.memory_space<vmem>>, %arg2: memref<4x32x8xf32, #tpu.memory_space<vmem>>, %arg3: memref<4x32x8xf32, #tpu.memory_space<vmem>>, %arg4: memref<4x1x8xf32, #tpu.memory_space<vmem>>, %arg5: memref<4x1x8xf32, #tpu.memory_space<vmem>>, %arg6: memref<4x1x8xf32, #tpu.memory_space<vmem>>, %arg7: memref<4x8x32xf32, #tpu.memory_space<vmem>>, %arg8: memref<1x32xf32, #tpu.memory_space<vmem>>, %arg9: memref<32x64xf32, #tpu.memory_space<vmem>>, %arg10: memref<1x64xf32, #tpu.memory_space<vmem>>, %arg11: memref<64x32xf32, #tpu.memory_space<vmem>>, %arg12: memref<1x32xf32, #tpu.memory_space<vmem>>, %arg13: memref<1x32xf32, #tpu.memory_space<vmem>>, %arg14: memref<1x32xf32, #tpu.memory_space<vmem>>, %arg15: memref<1x32xf32, #tpu.memory_space<vmem>>, %arg16: memref<1x32xf32, #tpu.memory_space<vmem>>, %arg17: memref<16x32xf32, #tpu.memory_space<vmem>>) attributes {dimension_semantics = [], scalar_prefetch = 0 : i64, scratch_operands = 0 : i64, tpu.core_type = #tpu.core_type<tc>} {
    %c0 = arith.constant 0 : index
    %c0_0 = arith.constant 0 : index
    %0 = vector.load %arg0[%c0, %c0_0] : memref<16x32xf32, #tpu.memory_space<vmem>>, vector<16x32xf32>
    %1 = tpu.iota {dimensions = array<i32: 0>} : vector<16x16xi32>
    %c2_i32 = arith.constant 2 : i32
    %c0_i32 = arith.constant 0 : i32
    %2 = arith.cmpi eq, %c2_i32, %c0_i32 : i32
    %c1_i32 = arith.constant 1 : i32
    %3 = arith.select %2, %c1_i32, %c2_i32 : i32
    %4 = vector.broadcast %3 : i32 to vector<16x16xi32>
    %5 = arith.remsi %1, %4 : vector<16x16xi32>
    %c0_i32_1 = arith.constant 0 : i32
    %6 = vector.broadcast %c0_i32_1 : i32 to vector<16x16xi32>
    %7 = arith.cmpi ne, %5, %6 : vector<16x16xi32>
    %c0_i32_2 = arith.constant 0 : i32
    %8 = vector.broadcast %c0_i32_2 : i32 to vector<16x16xi32>
    %9 = arith.cmpi slt, %5, %8 : vector<16x16xi32>
    %c0_i32_3 = arith.constant 0 : i32
    %10 = arith.cmpi slt, %3, %c0_i32_3 : i32
    %11 = vector.broadcast %10 : i1 to vector<16x16xi1>
    %12 = vector.broadcast %11 : vector<16x16xi1> to vector<16x16xi1>
    %13 = arith.xori %9, %12 : vector<16x16xi1>
    %14 = arith.andi %13, %7 : vector<16x16xi1>
    %15 = vector.broadcast %3 : i32 to vector<16x16xi32>
    %16 = arith.addi %5, %15 : vector<16x16xi32>
    %17 = arith.select %14, %16, %5 : vector<16x16xi1>, vector<16x16xi32>
    %18 = tpu.iota {dimensions = array<i32: 1>} : vector<16x16xi32>
    %c2_i32_4 = arith.constant 2 : i32
    %c0_i32_5 = arith.constant 0 : i32
    %19 = arith.cmpi eq, %c2_i32_4, %c0_i32_5 : i32
    %c1_i32_6 = arith.constant 1 : i32
    %20 = arith.select %19, %c1_i32_6, %c2_i32_4 : i32
    %21 = vector.broadcast %20 : i32 to vector<16x16xi32>
    %22 = arith.remsi %18, %21 : vector<16x16xi32>
    %c0_i32_7 = arith.constant 0 : i32
    %23 = vector.broadcast %c0_i32_7 : i32 to vector<16x16xi32>
    %24 = arith.cmpi ne, %22, %23 : vector<16x16xi32>
    %c0_i32_8 = arith.constant 0 : i32
    %25 = vector.broadcast %c0_i32_8 : i32 to vector<16x16xi32>
    %26 = arith.cmpi slt, %22, %25 : vector<16x16xi32>
    %c0_i32_9 = arith.constant 0 : i32
    %27 = arith.cmpi slt, %20, %c0_i32_9 : i32
    %28 = vector.broadcast %27 : i1 to vector<16x16xi1>
    %29 = vector.broadcast %28 : vector<16x16xi1> to vector<16x16xi1>
    %30 = arith.xori %26, %29 : vector<16x16xi1>
    %31 = arith.andi %30, %24 : vector<16x16xi1>
    %32 = vector.broadcast %20 : i32 to vector<16x16xi32>
    %33 = arith.addi %22, %32 : vector<16x16xi32>
    %34 = arith.select %31, %33, %22 : vector<16x16xi1>, vector<16x16xi32>
    %35 = arith.cmpi eq, %17, %34 : vector<16x16xi32>
    %cst = arith.constant 0.000000e+00 : f32
    %36 = vector.broadcast %cst : f32 to vector<16x32xf32>
    %c0_10 = arith.constant 0 : index
    %c0_11 = arith.constant 0 : index
    %c0_12 = arith.constant 0 : index
    %37 = vector.load %arg1[%c0_10, %c0_11, %c0_12] : memref<4x32x8xf32, #tpu.memory_space<vmem>>, vector<1x32x8xf32>
    %38 = vector.shape_cast %37 : vector<1x32x8xf32> to vector<32x8xf32>
    %cst_13 = arith.constant dense<0.000000e+00> : vector<16x8xf32>
    %39 = tpu.matmul %0, %38, %cst_13 {dimension_numbers = #tpu.dot_dimension_numbers<[1], [0], [0], [1], [0, 0, 1, 1], [], []>} : vector<16x32xf32>, vector<32x8xf32>, vector<16x8xf32> -> vector<16x8xf32>
    %c0_14 = arith.constant 0 : index
    %c0_15 = arith.constant 0 : index
    %c0_16 = arith.constant 0 : index
    %40 = vector.load %arg4[%c0_14, %c0_15, %c0_16] : memref<4x1x8xf32, #tpu.memory_space<vmem>>, vector<1x1x8xf32>
    %41 = vector.shape_cast %40 : vector<1x1x8xf32> to vector<1x8xf32>
    %42 = vector.broadcast %41 : vector<1x8xf32> to vector<16x8xf32>
    %43 = arith.addf %39, %42 : vector<16x8xf32>
    %c0_17 = arith.constant 0 : index
    %c0_18 = arith.constant 0 : index
    %c0_19 = arith.constant 0 : index
    %44 = vector.load %arg2[%c0_17, %c0_18, %c0_19] : memref<4x32x8xf32, #tpu.memory_space<vmem>>, vector<1x32x8xf32>
    %45 = vector.shape_cast %44 : vector<1x32x8xf32> to vector<32x8xf32>
    %cst_20 = arith.constant dense<0.000000e+00> : vector<16x8xf32>
    %46 = tpu.matmul %0, %45, %cst_20 {dimension_numbers = #tpu.dot_dimension_numbers<[1], [0], [0], [1], [0, 0, 1, 1], [], []>} : vector<16x32xf32>, vector<32x8xf32>, vector<16x8xf32> -> vector<16x8xf32>
    %c0_21 = arith.constant 0 : index
    %c0_22 = arith.constant 0 : index
    %c0_23 = arith.constant 0 : index
    %47 = vector.load %arg5[%c0_21, %c0_22, %c0_23] : memref<4x1x8xf32, #tpu.memory_space<vmem>>, vector<1x1x8xf32>
    %48 = vector.shape_cast %47 : vector<1x1x8xf32> to vector<1x8xf32>
    %49 = vector.broadcast %48 : vector<1x8xf32> to vector<16x8xf32>
    %50 = arith.addf %46, %49 : vector<16x8xf32>
    %c0_24 = arith.constant 0 : index
    %c0_25 = arith.constant 0 : index
    %c0_26 = arith.constant 0 : index
    %51 = vector.load %arg3[%c0_24, %c0_25, %c0_26] : memref<4x32x8xf32, #tpu.memory_space<vmem>>, vector<1x32x8xf32>
    %52 = vector.shape_cast %51 : vector<1x32x8xf32> to vector<32x8xf32>
    %cst_27 = arith.constant dense<0.000000e+00> : vector<16x8xf32>
    %53 = tpu.matmul %0, %52, %cst_27 {dimension_numbers = #tpu.dot_dimension_numbers<[1], [0], [0], [1], [0, 0, 1, 1], [], []>} : vector<16x32xf32>, vector<32x8xf32>, vector<16x8xf32> -> vector<16x8xf32>
    %c0_28 = arith.constant 0 : index
    %c0_29 = arith.constant 0 : index
    %c0_30 = arith.constant 0 : index
    %54 = vector.load %arg6[%c0_28, %c0_29, %c0_30] : memref<4x1x8xf32, #tpu.memory_space<vmem>>, vector<1x1x8xf32>
    %55 = vector.shape_cast %54 : vector<1x1x8xf32> to vector<1x8xf32>
    %56 = vector.broadcast %55 : vector<1x8xf32> to vector<16x8xf32>
    %57 = arith.addf %53, %56 : vector<16x8xf32>
    %cst_31 = arith.constant dense<0.000000e+00> : vector<16x16xf32>
    %58 = tpu.matmul %43, %50, %cst_31 {dimension_numbers = #tpu.dot_dimension_numbers<[1], [1], [0], [0], [0, 0, 1, 0], [], []>} : vector<16x8xf32>, vector<16x8xf32>, vector<16x16xf32> -> vector<16x16xf32>
    %cst_32 = arith.constant -1.000000e+30 : f32
    %59 = vector.broadcast %cst_32 : f32 to vector<16x16xf32>
    %60 = arith.select %35, %58, %59 : vector<16x16xi1>, vector<16x16xf32>
    %cst_33 = arith.constant dense<0xFF800000> : vector<16xf32>
    %61 = vector.multi_reduction <maximumf>, %60, %cst_33 [1] : vector<16x16xf32> to vector<16xf32>
    %62 = vector.shape_cast %61 : vector<16xf32> to vector<16x1xf32>
    %63 = vector.broadcast %62 : vector<16x1xf32> to vector<16x16xf32>
    %64 = arith.subf %60, %63 : vector<16x16xf32>
    %65 = math.exp %64 : vector<16x16xf32>
    %cst_34 = arith.constant dense<0.000000e+00> : vector<16xf32>
    %66 = vector.multi_reduction <add>, %65, %cst_34 [1] : vector<16x16xf32> to vector<16xf32>
    %67 = vector.shape_cast %66 : vector<16xf32> to vector<16x1xf32>
    %68 = tpu.reciprocal %67 : vector<16x1xf32> -> vector<16x1xf32>
    %69 = vector.broadcast %68 : vector<16x1xf32> to vector<16x16xf32>
    %70 = arith.mulf %65, %69 : vector<16x16xf32>
    %cst_35 = arith.constant dense<0.000000e+00> : vector<16x8xf32>
    %71 = tpu.matmul %70, %57, %cst_35 {dimension_numbers = #tpu.dot_dimension_numbers<[1], [0], [0], [1], [0, 0, 1, 1], [], []>} : vector<16x16xf32>, vector<16x8xf32>, vector<16x8xf32> -> vector<16x8xf32>
    %c0_36 = arith.constant 0 : index
    %c0_37 = arith.constant 0 : index
    %c0_38 = arith.constant 0 : index
    %72 = vector.load %arg7[%c0_36, %c0_37, %c0_38] : memref<4x8x32xf32, #tpu.memory_space<vmem>>, vector<1x8x32xf32>
    %73 = vector.shape_cast %72 : vector<1x8x32xf32> to vector<8x32xf32>
    %cst_39 = arith.constant dense<0.000000e+00> : vector<16x32xf32>
    %74 = tpu.matmul %71, %73, %cst_39 {dimension_numbers = #tpu.dot_dimension_numbers<[1], [0], [0], [1], [0, 0, 1, 1], [], []>} : vector<16x8xf32>, vector<8x32xf32>, vector<16x32xf32> -> vector<16x32xf32>
    %75 = arith.addf %36, %74 : vector<16x32xf32>
    %c1 = arith.constant 1 : index
    %c0_40 = arith.constant 0 : index
    %c0_41 = arith.constant 0 : index
    %76 = vector.load %arg1[%c1, %c0_40, %c0_41] : memref<4x32x8xf32, #tpu.memory_space<vmem>>, vector<1x32x8xf32>
    %77 = vector.shape_cast %76 : vector<1x32x8xf32> to vector<32x8xf32>
    %cst_42 = arith.constant dense<0.000000e+00> : vector<16x8xf32>
    %78 = tpu.matmul %0, %77, %cst_42 {dimension_numbers = #tpu.dot_dimension_numbers<[1], [0], [0], [1], [0, 0, 1, 1], [], []>} : vector<16x32xf32>, vector<32x8xf32>, vector<16x8xf32> -> vector<16x8xf32>
    %c1_43 = arith.constant 1 : index
    %c0_44 = arith.constant 0 : index
    %c0_45 = arith.constant 0 : index
    %79 = vector.load %arg4[%c1_43, %c0_44, %c0_45] : memref<4x1x8xf32, #tpu.memory_space<vmem>>, vector<1x1x8xf32>
    %80 = vector.shape_cast %79 : vector<1x1x8xf32> to vector<1x8xf32>
    %81 = vector.broadcast %80 : vector<1x8xf32> to vector<16x8xf32>
    %82 = arith.addf %78, %81 : vector<16x8xf32>
    %c1_46 = arith.constant 1 : index
    %c0_47 = arith.constant 0 : index
    %c0_48 = arith.constant 0 : index
    %83 = vector.load %arg2[%c1_46, %c0_47, %c0_48] : memref<4x32x8xf32, #tpu.memory_space<vmem>>, vector<1x32x8xf32>
    %84 = vector.shape_cast %83 : vector<1x32x8xf32> to vector<32x8xf32>
    %cst_49 = arith.constant dense<0.000000e+00> : vector<16x8xf32>
    %85 = tpu.matmul %0, %84, %cst_49 {dimension_numbers = #tpu.dot_dimension_numbers<[1], [0], [0], [1], [0, 0, 1, 1], [], []>} : vector<16x32xf32>, vector<32x8xf32>, vector<16x8xf32> -> vector<16x8xf32>
    %c1_50 = arith.constant 1 : index
    %c0_51 = arith.constant 0 : index
    %c0_52 = arith.constant 0 : index
    %86 = vector.load %arg5[%c1_50, %c0_51, %c0_52] : memref<4x1x8xf32, #tpu.memory_space<vmem>>, vector<1x1x8xf32>
    %87 = vector.shape_cast %86 : vector<1x1x8xf32> to vector<1x8xf32>
    %88 = vector.broadcast %87 : vector<1x8xf32> to vector<16x8xf32>
    %89 = arith.addf %85, %88 : vector<16x8xf32>
    %c1_53 = arith.constant 1 : index
    %c0_54 = arith.constant 0 : index
    %c0_55 = arith.constant 0 : index
    %90 = vector.load %arg3[%c1_53, %c0_54, %c0_55] : memref<4x32x8xf32, #tpu.memory_space<vmem>>, vector<1x32x8xf32>
    %91 = vector.shape_cast %90 : vector<1x32x8xf32> to vector<32x8xf32>
    %cst_56 = arith.constant dense<0.000000e+00> : vector<16x8xf32>
    %92 = tpu.matmul %0, %91, %cst_56 {dimension_numbers = #tpu.dot_dimension_numbers<[1], [0], [0], [1], [0, 0, 1, 1], [], []>} : vector<16x32xf32>, vector<32x8xf32>, vector<16x8xf32> -> vector<16x8xf32>
    %c1_57 = arith.constant 1 : index
    %c0_58 = arith.constant 0 : index
    %c0_59 = arith.constant 0 : index
    %93 = vector.load %arg6[%c1_57, %c0_58, %c0_59] : memref<4x1x8xf32, #tpu.memory_space<vmem>>, vector<1x1x8xf32>
    %94 = vector.shape_cast %93 : vector<1x1x8xf32> to vector<1x8xf32>
    %95 = vector.broadcast %94 : vector<1x8xf32> to vector<16x8xf32>
    %96 = arith.addf %92, %95 : vector<16x8xf32>
    %cst_60 = arith.constant dense<0.000000e+00> : vector<16x16xf32>
    %97 = tpu.matmul %82, %89, %cst_60 {dimension_numbers = #tpu.dot_dimension_numbers<[1], [1], [0], [0], [0, 0, 1, 0], [], []>} : vector<16x8xf32>, vector<16x8xf32>, vector<16x16xf32> -> vector<16x16xf32>
    %cst_61 = arith.constant -1.000000e+30 : f32
    %98 = vector.broadcast %cst_61 : f32 to vector<16x16xf32>
    %99 = arith.select %35, %97, %98 : vector<16x16xi1>, vector<16x16xf32>
    %cst_62 = arith.constant dense<0xFF800000> : vector<16xf32>
    %100 = vector.multi_reduction <maximumf>, %99, %cst_62 [1] : vector<16x16xf32> to vector<16xf32>
    %101 = vector.shape_cast %100 : vector<16xf32> to vector<16x1xf32>
    %102 = vector.broadcast %101 : vector<16x1xf32> to vector<16x16xf32>
    %103 = arith.subf %99, %102 : vector<16x16xf32>
    %104 = math.exp %103 : vector<16x16xf32>
    %cst_63 = arith.constant dense<0.000000e+00> : vector<16xf32>
    %105 = vector.multi_reduction <add>, %104, %cst_63 [1] : vector<16x16xf32> to vector<16xf32>
    %106 = vector.shape_cast %105 : vector<16xf32> to vector<16x1xf32>
    %107 = tpu.reciprocal %106 : vector<16x1xf32> -> vector<16x1xf32>
    %108 = vector.broadcast %107 : vector<16x1xf32> to vector<16x16xf32>
    %109 = arith.mulf %104, %108 : vector<16x16xf32>
    %cst_64 = arith.constant dense<0.000000e+00> : vector<16x8xf32>
    %110 = tpu.matmul %109, %96, %cst_64 {dimension_numbers = #tpu.dot_dimension_numbers<[1], [0], [0], [1], [0, 0, 1, 1], [], []>} : vector<16x16xf32>, vector<16x8xf32>, vector<16x8xf32> -> vector<16x8xf32>
    %c1_65 = arith.constant 1 : index
    %c0_66 = arith.constant 0 : index
    %c0_67 = arith.constant 0 : index
    %111 = vector.load %arg7[%c1_65, %c0_66, %c0_67] : memref<4x8x32xf32, #tpu.memory_space<vmem>>, vector<1x8x32xf32>
    %112 = vector.shape_cast %111 : vector<1x8x32xf32> to vector<8x32xf32>
    %cst_68 = arith.constant dense<0.000000e+00> : vector<16x32xf32>
    %113 = tpu.matmul %110, %112, %cst_68 {dimension_numbers = #tpu.dot_dimension_numbers<[1], [0], [0], [1], [0, 0, 1, 1], [], []>} : vector<16x8xf32>, vector<8x32xf32>, vector<16x32xf32> -> vector<16x32xf32>
    %114 = arith.addf %75, %113 : vector<16x32xf32>
    %c2 = arith.constant 2 : index
    %c0_69 = arith.constant 0 : index
    %c0_70 = arith.constant 0 : index
    %115 = vector.load %arg1[%c2, %c0_69, %c0_70] : memref<4x32x8xf32, #tpu.memory_space<vmem>>, vector<1x32x8xf32>
    %116 = vector.shape_cast %115 : vector<1x32x8xf32> to vector<32x8xf32>
    %cst_71 = arith.constant dense<0.000000e+00> : vector<16x8xf32>
    %117 = tpu.matmul %0, %116, %cst_71 {dimension_numbers = #tpu.dot_dimension_numbers<[1], [0], [0], [1], [0, 0, 1, 1], [], []>} : vector<16x32xf32>, vector<32x8xf32>, vector<16x8xf32> -> vector<16x8xf32>
    %c2_72 = arith.constant 2 : index
    %c0_73 = arith.constant 0 : index
    %c0_74 = arith.constant 0 : index
    %118 = vector.load %arg4[%c2_72, %c0_73, %c0_74] : memref<4x1x8xf32, #tpu.memory_space<vmem>>, vector<1x1x8xf32>
    %119 = vector.shape_cast %118 : vector<1x1x8xf32> to vector<1x8xf32>
    %120 = vector.broadcast %119 : vector<1x8xf32> to vector<16x8xf32>
    %121 = arith.addf %117, %120 : vector<16x8xf32>
    %c2_75 = arith.constant 2 : index
    %c0_76 = arith.constant 0 : index
    %c0_77 = arith.constant 0 : index
    %122 = vector.load %arg2[%c2_75, %c0_76, %c0_77] : memref<4x32x8xf32, #tpu.memory_space<vmem>>, vector<1x32x8xf32>
    %123 = vector.shape_cast %122 : vector<1x32x8xf32> to vector<32x8xf32>
    %cst_78 = arith.constant dense<0.000000e+00> : vector<16x8xf32>
    %124 = tpu.matmul %0, %123, %cst_78 {dimension_numbers = #tpu.dot_dimension_numbers<[1], [0], [0], [1], [0, 0, 1, 1], [], []>} : vector<16x32xf32>, vector<32x8xf32>, vector<16x8xf32> -> vector<16x8xf32>
    %c2_79 = arith.constant 2 : index
    %c0_80 = arith.constant 0 : index
    %c0_81 = arith.constant 0 : index
    %125 = vector.load %arg5[%c2_79, %c0_80, %c0_81] : memref<4x1x8xf32, #tpu.memory_space<vmem>>, vector<1x1x8xf32>
    %126 = vector.shape_cast %125 : vector<1x1x8xf32> to vector<1x8xf32>
    %127 = vector.broadcast %126 : vector<1x8xf32> to vector<16x8xf32>
    %128 = arith.addf %124, %127 : vector<16x8xf32>
    %c2_82 = arith.constant 2 : index
    %c0_83 = arith.constant 0 : index
    %c0_84 = arith.constant 0 : index
    %129 = vector.load %arg3[%c2_82, %c0_83, %c0_84] : memref<4x32x8xf32, #tpu.memory_space<vmem>>, vector<1x32x8xf32>
    %130 = vector.shape_cast %129 : vector<1x32x8xf32> to vector<32x8xf32>
    %cst_85 = arith.constant dense<0.000000e+00> : vector<16x8xf32>
    %131 = tpu.matmul %0, %130, %cst_85 {dimension_numbers = #tpu.dot_dimension_numbers<[1], [0], [0], [1], [0, 0, 1, 1], [], []>} : vector<16x32xf32>, vector<32x8xf32>, vector<16x8xf32> -> vector<16x8xf32>
    %c2_86 = arith.constant 2 : index
    %c0_87 = arith.constant 0 : index
    %c0_88 = arith.constant 0 : index
    %132 = vector.load %arg6[%c2_86, %c0_87, %c0_88] : memref<4x1x8xf32, #tpu.memory_space<vmem>>, vector<1x1x8xf32>
    %133 = vector.shape_cast %132 : vector<1x1x8xf32> to vector<1x8xf32>
    %134 = vector.broadcast %133 : vector<1x8xf32> to vector<16x8xf32>
    %135 = arith.addf %131, %134 : vector<16x8xf32>
    %cst_89 = arith.constant dense<0.000000e+00> : vector<16x16xf32>
    %136 = tpu.matmul %121, %128, %cst_89 {dimension_numbers = #tpu.dot_dimension_numbers<[1], [1], [0], [0], [0, 0, 1, 0], [], []>} : vector<16x8xf32>, vector<16x8xf32>, vector<16x16xf32> -> vector<16x16xf32>
    %cst_90 = arith.constant -1.000000e+30 : f32
    %137 = vector.broadcast %cst_90 : f32 to vector<16x16xf32>
    %138 = arith.select %35, %136, %137 : vector<16x16xi1>, vector<16x16xf32>
    %cst_91 = arith.constant dense<0xFF800000> : vector<16xf32>
    %139 = vector.multi_reduction <maximumf>, %138, %cst_91 [1] : vector<16x16xf32> to vector<16xf32>
    %140 = vector.shape_cast %139 : vector<16xf32> to vector<16x1xf32>
    %141 = vector.broadcast %140 : vector<16x1xf32> to vector<16x16xf32>
    %142 = arith.subf %138, %141 : vector<16x16xf32>
    %143 = math.exp %142 : vector<16x16xf32>
    %cst_92 = arith.constant dense<0.000000e+00> : vector<16xf32>
    %144 = vector.multi_reduction <add>, %143, %cst_92 [1] : vector<16x16xf32> to vector<16xf32>
    %145 = vector.shape_cast %144 : vector<16xf32> to vector<16x1xf32>
    %146 = tpu.reciprocal %145 : vector<16x1xf32> -> vector<16x1xf32>
    %147 = vector.broadcast %146 : vector<16x1xf32> to vector<16x16xf32>
    %148 = arith.mulf %143, %147 : vector<16x16xf32>
    %cst_93 = arith.constant dense<0.000000e+00> : vector<16x8xf32>
    %149 = tpu.matmul %148, %135, %cst_93 {dimension_numbers = #tpu.dot_dimension_numbers<[1], [0], [0], [1], [0, 0, 1, 1], [], []>} : vector<16x16xf32>, vector<16x8xf32>, vector<16x8xf32> -> vector<16x8xf32>
    %c2_94 = arith.constant 2 : index
    %c0_95 = arith.constant 0 : index
    %c0_96 = arith.constant 0 : index
    %150 = vector.load %arg7[%c2_94, %c0_95, %c0_96] : memref<4x8x32xf32, #tpu.memory_space<vmem>>, vector<1x8x32xf32>
    %151 = vector.shape_cast %150 : vector<1x8x32xf32> to vector<8x32xf32>
    %cst_97 = arith.constant dense<0.000000e+00> : vector<16x32xf32>
    %152 = tpu.matmul %149, %151, %cst_97 {dimension_numbers = #tpu.dot_dimension_numbers<[1], [0], [0], [1], [0, 0, 1, 1], [], []>} : vector<16x8xf32>, vector<8x32xf32>, vector<16x32xf32> -> vector<16x32xf32>
    %153 = arith.addf %114, %152 : vector<16x32xf32>
    %c3 = arith.constant 3 : index
    %c0_98 = arith.constant 0 : index
    %c0_99 = arith.constant 0 : index
    %154 = vector.load %arg1[%c3, %c0_98, %c0_99] : memref<4x32x8xf32, #tpu.memory_space<vmem>>, vector<1x32x8xf32>
    %155 = vector.shape_cast %154 : vector<1x32x8xf32> to vector<32x8xf32>
    %cst_100 = arith.constant dense<0.000000e+00> : vector<16x8xf32>
    %156 = tpu.matmul %0, %155, %cst_100 {dimension_numbers = #tpu.dot_dimension_numbers<[1], [0], [0], [1], [0, 0, 1, 1], [], []>} : vector<16x32xf32>, vector<32x8xf32>, vector<16x8xf32> -> vector<16x8xf32>
    %c3_101 = arith.constant 3 : index
    %c0_102 = arith.constant 0 : index
    %c0_103 = arith.constant 0 : index
    %157 = vector.load %arg4[%c3_101, %c0_102, %c0_103] : memref<4x1x8xf32, #tpu.memory_space<vmem>>, vector<1x1x8xf32>
    %158 = vector.shape_cast %157 : vector<1x1x8xf32> to vector<1x8xf32>
    %159 = vector.broadcast %158 : vector<1x8xf32> to vector<16x8xf32>
    %160 = arith.addf %156, %159 : vector<16x8xf32>
    %c3_104 = arith.constant 3 : index
    %c0_105 = arith.constant 0 : index
    %c0_106 = arith.constant 0 : index
    %161 = vector.load %arg2[%c3_104, %c0_105, %c0_106] : memref<4x32x8xf32, #tpu.memory_space<vmem>>, vector<1x32x8xf32>
    %162 = vector.shape_cast %161 : vector<1x32x8xf32> to vector<32x8xf32>
    %cst_107 = arith.constant dense<0.000000e+00> : vector<16x8xf32>
    %163 = tpu.matmul %0, %162, %cst_107 {dimension_numbers = #tpu.dot_dimension_numbers<[1], [0], [0], [1], [0, 0, 1, 1], [], []>} : vector<16x32xf32>, vector<32x8xf32>, vector<16x8xf32> -> vector<16x8xf32>
    %c3_108 = arith.constant 3 : index
    %c0_109 = arith.constant 0 : index
    %c0_110 = arith.constant 0 : index
    %164 = vector.load %arg5[%c3_108, %c0_109, %c0_110] : memref<4x1x8xf32, #tpu.memory_space<vmem>>, vector<1x1x8xf32>
    %165 = vector.shape_cast %164 : vector<1x1x8xf32> to vector<1x8xf32>
    %166 = vector.broadcast %165 : vector<1x8xf32> to vector<16x8xf32>
    %167 = arith.addf %163, %166 : vector<16x8xf32>
    %c3_111 = arith.constant 3 : index
    %c0_112 = arith.constant 0 : index
    %c0_113 = arith.constant 0 : index
    %168 = vector.load %arg3[%c3_111, %c0_112, %c0_113] : memref<4x32x8xf32, #tpu.memory_space<vmem>>, vector<1x32x8xf32>
    %169 = vector.shape_cast %168 : vector<1x32x8xf32> to vector<32x8xf32>
    %cst_114 = arith.constant dense<0.000000e+00> : vector<16x8xf32>
    %170 = tpu.matmul %0, %169, %cst_114 {dimension_numbers = #tpu.dot_dimension_numbers<[1], [0], [0], [1], [0, 0, 1, 1], [], []>} : vector<16x32xf32>, vector<32x8xf32>, vector<16x8xf32> -> vector<16x8xf32>
    %c3_115 = arith.constant 3 : index
    %c0_116 = arith.constant 0 : index
    %c0_117 = arith.constant 0 : index
    %171 = vector.load %arg6[%c3_115, %c0_116, %c0_117] : memref<4x1x8xf32, #tpu.memory_space<vmem>>, vector<1x1x8xf32>
    %172 = vector.shape_cast %171 : vector<1x1x8xf32> to vector<1x8xf32>
    %173 = vector.broadcast %172 : vector<1x8xf32> to vector<16x8xf32>
    %174 = arith.addf %170, %173 : vector<16x8xf32>
    %cst_118 = arith.constant dense<0.000000e+00> : vector<16x16xf32>
    %175 = tpu.matmul %160, %167, %cst_118 {dimension_numbers = #tpu.dot_dimension_numbers<[1], [1], [0], [0], [0, 0, 1, 0], [], []>} : vector<16x8xf32>, vector<16x8xf32>, vector<16x16xf32> -> vector<16x16xf32>
    %cst_119 = arith.constant -1.000000e+30 : f32
    %176 = vector.broadcast %cst_119 : f32 to vector<16x16xf32>
    %177 = arith.select %35, %175, %176 : vector<16x16xi1>, vector<16x16xf32>
    %cst_120 = arith.constant dense<0xFF800000> : vector<16xf32>
    %178 = vector.multi_reduction <maximumf>, %177, %cst_120 [1] : vector<16x16xf32> to vector<16xf32>
    %179 = vector.shape_cast %178 : vector<16xf32> to vector<16x1xf32>
    %180 = vector.broadcast %179 : vector<16x1xf32> to vector<16x16xf32>
    %181 = arith.subf %177, %180 : vector<16x16xf32>
    %182 = math.exp %181 : vector<16x16xf32>
    %cst_121 = arith.constant dense<0.000000e+00> : vector<16xf32>
    %183 = vector.multi_reduction <add>, %182, %cst_121 [1] : vector<16x16xf32> to vector<16xf32>
    %184 = vector.shape_cast %183 : vector<16xf32> to vector<16x1xf32>
    %185 = tpu.reciprocal %184 : vector<16x1xf32> -> vector<16x1xf32>
    %186 = vector.broadcast %185 : vector<16x1xf32> to vector<16x16xf32>
    %187 = arith.mulf %182, %186 : vector<16x16xf32>
    %cst_122 = arith.constant dense<0.000000e+00> : vector<16x8xf32>
    %188 = tpu.matmul %187, %174, %cst_122 {dimension_numbers = #tpu.dot_dimension_numbers<[1], [0], [0], [1], [0, 0, 1, 1], [], []>} : vector<16x16xf32>, vector<16x8xf32>, vector<16x8xf32> -> vector<16x8xf32>
    %c3_123 = arith.constant 3 : index
    %c0_124 = arith.constant 0 : index
    %c0_125 = arith.constant 0 : index
    %189 = vector.load %arg7[%c3_123, %c0_124, %c0_125] : memref<4x8x32xf32, #tpu.memory_space<vmem>>, vector<1x8x32xf32>
    %190 = vector.shape_cast %189 : vector<1x8x32xf32> to vector<8x32xf32>
    %cst_126 = arith.constant dense<0.000000e+00> : vector<16x32xf32>
    %191 = tpu.matmul %188, %190, %cst_126 {dimension_numbers = #tpu.dot_dimension_numbers<[1], [0], [0], [1], [0, 0, 1, 1], [], []>} : vector<16x8xf32>, vector<8x32xf32>, vector<16x32xf32> -> vector<16x32xf32>
    %192 = arith.addf %153, %191 : vector<16x32xf32>
    %c0_127 = arith.constant 0 : index
    %c0_128 = arith.constant 0 : index
    %193 = vector.load %arg8[%c0_127, %c0_128] : memref<1x32xf32, #tpu.memory_space<vmem>>, vector<1x32xf32>
    %194 = vector.broadcast %193 : vector<1x32xf32> to vector<16x32xf32>
    %195 = arith.addf %192, %194 : vector<16x32xf32>
    %196 = arith.addf %0, %195 : vector<16x32xf32>
    %c0_129 = arith.constant 0 : index
    %c0_130 = arith.constant 0 : index
    %197 = vector.load %arg13[%c0_129, %c0_130] : memref<1x32xf32, #tpu.memory_space<vmem>>, vector<1x32xf32>
    %c0_131 = arith.constant 0 : index
    %c0_132 = arith.constant 0 : index
    %198 = vector.load %arg14[%c0_131, %c0_132] : memref<1x32xf32, #tpu.memory_space<vmem>>, vector<1x32xf32>
    %cst_133 = arith.constant dense<0.000000e+00> : vector<16xf32>
    %199 = vector.multi_reduction <add>, %196, %cst_133 [1] : vector<16x32xf32> to vector<16xf32>
    %200 = vector.shape_cast %199 : vector<16xf32> to vector<16x1xf32>
    %cst_134 = arith.constant 3.200000e+01 : f32
    %201 = vector.broadcast %cst_134 : f32 to vector<16x1xf32>
    %202 = arith.divf %200, %201 : vector<16x1xf32>
    %203 = vector.broadcast %202 : vector<16x1xf32> to vector<16x32xf32>
    %204 = arith.subf %196, %203 : vector<16x32xf32>
    %205 = arith.mulf %204, %204 : vector<16x32xf32>
    %cst_135 = arith.constant dense<0.000000e+00> : vector<16xf32>
    %206 = vector.multi_reduction <add>, %205, %cst_135 [1] : vector<16x32xf32> to vector<16xf32>
    %207 = vector.shape_cast %206 : vector<16xf32> to vector<16x1xf32>
    %cst_136 = arith.constant 3.200000e+01 : f32
    %208 = vector.broadcast %cst_136 : f32 to vector<16x1xf32>
    %209 = arith.divf %207, %208 : vector<16x1xf32>
    %210 = vector.broadcast %202 : vector<16x1xf32> to vector<16x32xf32>
    %211 = arith.subf %196, %210 : vector<16x32xf32>
    %cst_137 = arith.constant 9.99999974E-6 : f32
    %212 = vector.broadcast %cst_137 : f32 to vector<16x1xf32>
    %213 = arith.addf %209, %212 : vector<16x1xf32>
    %214 = math.rsqrt %213 : vector<16x1xf32>
    %215 = vector.broadcast %214 : vector<16x1xf32> to vector<16x32xf32>
    %216 = arith.mulf %211, %215 : vector<16x32xf32>
    %217 = vector.broadcast %197 : vector<1x32xf32> to vector<16x32xf32>
    %218 = arith.mulf %216, %217 : vector<16x32xf32>
    %219 = vector.broadcast %198 : vector<1x32xf32> to vector<16x32xf32>
    %220 = arith.addf %218, %219 : vector<16x32xf32>
    %c0_138 = arith.constant 0 : index
    %c0_139 = arith.constant 0 : index
    %221 = vector.load %arg9[%c0_138, %c0_139] : memref<32x64xf32, #tpu.memory_space<vmem>>, vector<32x64xf32>
    %cst_140 = arith.constant dense<0.000000e+00> : vector<16x64xf32>
    %222 = tpu.matmul %220, %221, %cst_140 {dimension_numbers = #tpu.dot_dimension_numbers<[1], [0], [0], [1], [0, 0, 1, 1], [], []>} : vector<16x32xf32>, vector<32x64xf32>, vector<16x64xf32> -> vector<16x64xf32>
    %c0_141 = arith.constant 0 : index
    %c0_142 = arith.constant 0 : index
    %223 = vector.load %arg10[%c0_141, %c0_142] : memref<1x64xf32, #tpu.memory_space<vmem>>, vector<1x64xf32>
    %224 = vector.broadcast %223 : vector<1x64xf32> to vector<16x64xf32>
    %225 = arith.addf %222, %224 : vector<16x64xf32>
    %cst_143 = arith.constant 0.000000e+00 : f32
    %226 = vector.broadcast %cst_143 : f32 to vector<16x64xf32>
    %227 = arith.maximumf %225, %226 : vector<16x64xf32>
    %c0_144 = arith.constant 0 : index
    %c0_145 = arith.constant 0 : index
    %228 = vector.load %arg11[%c0_144, %c0_145] : memref<64x32xf32, #tpu.memory_space<vmem>>, vector<64x32xf32>
    %cst_146 = arith.constant dense<0.000000e+00> : vector<16x32xf32>
    %229 = tpu.matmul %227, %228, %cst_146 {dimension_numbers = #tpu.dot_dimension_numbers<[1], [0], [0], [1], [0, 0, 1, 1], [], []>} : vector<16x64xf32>, vector<64x32xf32>, vector<16x32xf32> -> vector<16x32xf32>
    %c0_147 = arith.constant 0 : index
    %c0_148 = arith.constant 0 : index
    %230 = vector.load %arg12[%c0_147, %c0_148] : memref<1x32xf32, #tpu.memory_space<vmem>>, vector<1x32xf32>
    %231 = vector.broadcast %230 : vector<1x32xf32> to vector<16x32xf32>
    %232 = arith.addf %229, %231 : vector<16x32xf32>
    %233 = arith.addf %220, %232 : vector<16x32xf32>
    %c0_149 = arith.constant 0 : index
    %c0_150 = arith.constant 0 : index
    %234 = vector.load %arg15[%c0_149, %c0_150] : memref<1x32xf32, #tpu.memory_space<vmem>>, vector<1x32xf32>
    %c0_151 = arith.constant 0 : index
    %c0_152 = arith.constant 0 : index
    %235 = vector.load %arg16[%c0_151, %c0_152] : memref<1x32xf32, #tpu.memory_space<vmem>>, vector<1x32xf32>
    %cst_153 = arith.constant dense<0.000000e+00> : vector<16xf32>
    %236 = vector.multi_reduction <add>, %233, %cst_153 [1] : vector<16x32xf32> to vector<16xf32>
    %237 = vector.shape_cast %236 : vector<16xf32> to vector<16x1xf32>
    %cst_154 = arith.constant 3.200000e+01 : f32
    %238 = vector.broadcast %cst_154 : f32 to vector<16x1xf32>
    %239 = arith.divf %237, %238 : vector<16x1xf32>
    %240 = vector.broadcast %239 : vector<16x1xf32> to vector<16x32xf32>
    %241 = arith.subf %233, %240 : vector<16x32xf32>
    %242 = arith.mulf %241, %241 : vector<16x32xf32>
    %cst_155 = arith.constant dense<0.000000e+00> : vector<16xf32>
    %243 = vector.multi_reduction <add>, %242, %cst_155 [1] : vector<16x32xf32> to vector<16xf32>
    %244 = vector.shape_cast %243 : vector<16xf32> to vector<16x1xf32>
    %cst_156 = arith.constant 3.200000e+01 : f32
    %245 = vector.broadcast %cst_156 : f32 to vector<16x1xf32>
    %246 = arith.divf %244, %245 : vector<16x1xf32>
    %247 = vector.broadcast %239 : vector<16x1xf32> to vector<16x32xf32>
    %248 = arith.subf %233, %247 : vector<16x32xf32>
    %cst_157 = arith.constant 9.99999974E-6 : f32
    %249 = vector.broadcast %cst_157 : f32 to vector<16x1xf32>
    %250 = arith.addf %246, %249 : vector<16x1xf32>
    %251 = math.rsqrt %250 : vector<16x1xf32>
    %252 = vector.broadcast %251 : vector<16x1xf32> to vector<16x32xf32>
    %253 = arith.mulf %248, %252 : vector<16x32xf32>
    %254 = vector.broadcast %234 : vector<1x32xf32> to vector<16x32xf32>
    %255 = arith.mulf %253, %254 : vector<16x32xf32>
    %256 = vector.broadcast %235 : vector<1x32xf32> to vector<16x32xf32>
    %257 = arith.addf %255, %256 : vector<16x32xf32>
    %c0_158 = arith.constant 0 : index
    %c0_159 = arith.constant 0 : index
    %258 = vector.load %arg17[%c0_158, %c0_159] : memref<16x32xf32, #tpu.memory_space<vmem>>, vector<16x32xf32>
    tpu.vector_store %arg17[%c0_158, %c0_159], %257 {strides = array<i32>} : memref<16x32xf32, #tpu.memory_space<vmem>>, vector<16x32xf32>,
    return
  }
}

</mosaic_0001>

<llo_original>
// kernel: tpu_custom_call.1
$region0: #{tpu_custom_call.1}
  #allocation0 [shape = 'u32[]', space=smem, size = 0x4, offset = 0x4, fixed_abs, tag = 'smem constant byte address 0x4 - core index']
  #allocation1 [shape = 'u32[72,128]{1,0:T(1,128)}', space=vmem, size = 0x9000, scoped, tag = 'internal scratch']
  %s0 = inlined_call_operand.vmem [shape: f32[16,32], index: 0, kind: input, shape index: {}]
  %s1 = inlined_call_operand.vmem [shape: f32[4,32,8], index: 1, kind: input, shape index: {}]
  %s2 = inlined_call_operand.vmem [shape: f32[4,32,8], index: 2, kind: input, shape index: {}]
  %s3 = inlined_call_operand.vmem [shape: f32[4,32,8], index: 3, kind: input, shape index: {}]
  %s4 = inlined_call_operand.vmem [shape: f32[4,1,8], index: 4, kind: input, shape index: {}]
  %s5 = inlined_call_operand.vmem [shape: f32[4,1,8], index: 5, kind: input, shape index: {}]
  %s6 = inlined_call_operand.vmem [shape: f32[4,1,8], index: 6, kind: input, shape index: {}]
  %s7 = inlined_call_operand.vmem [shape: f32[4,8,32], index: 7, kind: input, shape index: {}]
  %s8 = inlined_call_operand.vmem [shape: f32[1,32], index: 8, kind: input, shape index: {}]
  %s9 = inlined_call_operand.vmem [shape: f32[32,64], index: 9, kind: input, shape index: {}]
  %s10 = inlined_call_operand.vmem [shape: f32[1,64], index: 10, kind: input, shape index: {}]
  %s11 = inlined_call_operand.vmem [shape: f32[64,32], index: 11, kind: input, shape index: {}]
  %s12 = inlined_call_operand.vmem [shape: f32[1,32], index: 12, kind: input, shape index: {}]
  %s13 = inlined_call_operand.vmem [shape: f32[1,32], index: 13, kind: input, shape index: {}]
  %s14 = inlined_call_operand.vmem [shape: f32[1,32], index: 14, kind: input, shape index: {}]
  %s15 = inlined_call_operand.vmem [shape: f32[1,32], index: 15, kind: input, shape index: {}]
  %s16 = inlined_call_operand.vmem [shape: f32[1,32], index: 16, kind: input, shape index: {}]
  %s17 = inlined_call_operand.hbm [shape: f32[16,32], index: 17, kind: output, shape index: {}]
  %s18 = sld [smem:[#allocation0]]
  $region78: #{tpu_custom_call.1} parent=0
    _
  %s20 = ssub.s32 1, %s18
  %s21 = scalar_select 0, %s20, %s18
  $region1: #{tpu_custom_call.1} parent=0
    #allocation2 [shape = 'u8[8192]{0}', space=vmem, size = 0x2000, scoped, tag = 'output window, operand 0, single buffered']
    #allocation3 [shape = 's32[1]{0}', space=sflag, size = 0x4, scoped, tag = 'scoped memory for tpu_custom_call.1']
    %22 = vsyncpa [#allocation3], 0
    // Predicated region
    $region2: #{tpu_custom_call.1} parent=1 // pred_check
      _
    $region3: #{tpu_custom_call.1} parent=1 // pred_check_branch
      %24 = sbr.rel (0) target = $region5
    $region4: #{tpu_custom_call.1} parent=1 // pred_region
      _
    $region5: #{tpu_custom_call.1} parent=1 // pred_fallthru
      _
    // Predicated region
    $region6: #{tpu_custom_call.1} parent=1 // pred_check
      _
    $region7: #{tpu_custom_call.1} parent=1 // pred_check_branch
      %26 = sbr.rel (0) target = $region9
    $region8: #{tpu_custom_call.1} parent=1 // pred_region
      _
    $region9: #{tpu_custom_call.1} parent=1 // pred_fallthru
      _
    // Predicated region
    $region10: #{tpu_custom_call.1} parent=1 // pred_check
      _
    $region11: #{tpu_custom_call.1} parent=1 // pred_check_branch
      %28 = sbr.rel (0) target = $region13
    $region12: #{tpu_custom_call.1} parent=1 // pred_region
      _
    $region13: #{tpu_custom_call.1} parent=1 // pred_fallthru
      _
    // Predicated region
    $region14: #{tpu_custom_call.1} parent=1 // pred_check
      _
    $region15: #{tpu_custom_call.1} parent=1 // pred_check_branch
      %30 = sbr.rel (0) target = $region17
    $region16: #{tpu_custom_call.1} parent=1 // pred_region
      _
    $region17: #{tpu_custom_call.1} parent=1 // pred_fallthru
      _
    // Predicated region
    $region18: #{tpu_custom_call.1} parent=1 // pred_check
      _
    $region19: #{tpu_custom_call.1} parent=1 // pred_check_branch
      %32 = sbr.rel (0) target = $region21
    $region20: #{tpu_custom_call.1} parent=1 // pred_region
      _
    $region21: #{tpu_custom_call.1} parent=1 // pred_fallthru
      _
    // Predicated region
    $region22: #{tpu_custom_call.1} parent=1 // pred_check
      _
    $region23: #{tpu_custom_call.1} parent=1 // pred_check_branch
      %34 = sbr.rel (0) target = $region25
    $region24: #{tpu_custom_call.1} parent=1 // pred_region
      _
    $region25: #{tpu_custom_call.1} parent=1 // pred_fallthru
      _
    // Predicated region
    $region26: #{tpu_custom_call.1} parent=1 // pred_check
      _
    $region27: #{tpu_custom_call.1} parent=1 // pred_check_branch
      %36 = sbr.rel (0) target = $region29
    $region28: #{tpu_custom_call.1} parent=1 // pred_region
      _
    $region29: #{tpu_custom_call.1} parent=1 // pred_fallthru
      _
    // Predicated region
    $region30: #{tpu_custom_call.1} parent=1 // pred_check
      _
    $region31: #{tpu_custom_call.1} parent=1 // pred_check_branch
      %38 = sbr.rel (0) target = $region33
    $region32: #{tpu_custom_call.1} parent=1 // pred_region
      _
    $region33: #{tpu_custom_call.1} parent=1 // pred_fallthru
      _
    // Predicated region
    $region34: #{tpu_custom_call.1} parent=1 // pred_check
      _
    $region35: #{tpu_custom_call.1} parent=1 // pred_check_branch
      %40 = sbr.rel (0) target = $region37
    $region36: #{tpu_custom_call.1} parent=1 // pred_region
      _
    $region37: #{tpu_custom_call.1} parent=1 // pred_fallthru
      _
    // Predicated region
    $region38: #{tpu_custom_call.1} parent=1 // pred_check
      _
    $region39: #{tpu_custom_call.1} parent=1 // pred_check_branch
      %42 = sbr.rel (0) target = $region41
    $region40: #{tpu_custom_call.1} parent=1 // pred_region
      _
    $region41: #{tpu_custom_call.1} parent=1 // pred_fallthru
      _
    // Predicated region
    $region42: #{tpu_custom_call.1} parent=1 // pred_check
      _
    $region43: #{tpu_custom_call.1} parent=1 // pred_check_branch
      %44 = sbr.rel (0) target = $region45
    $region44: #{tpu_custom_call.1} parent=1 // pred_region
      _
    $region45: #{tpu_custom_call.1} parent=1 // pred_fallthru
      _
    // Predicated region
    $region46: #{tpu_custom_call.1} parent=1 // pred_check
      _
    $region47: #{tpu_custom_call.1} parent=1 // pred_check_branch
      %46 = sbr.rel (0) target = $region49
    $region48: #{tpu_custom_call.1} parent=1 // pred_region
      _
    $region49: #{tpu_custom_call.1} parent=1 // pred_fallthru
      _
    // Predicated region
    $region50: #{tpu_custom_call.1} parent=1 // pred_check
      _
    $region51: #{tpu_custom_call.1} parent=1 // pred_check_branch
      %48 = sbr.rel (0) target = $region53
    $region52: #{tpu_custom_call.1} parent=1 // pred_region
      _
    $region53: #{tpu_custom_call.1} parent=1 // pred_fallthru
      _
    // Predicated region
    $region54: #{tpu_custom_call.1} parent=1 // pred_check
      _
    $region55: #{tpu_custom_call.1} parent=1 // pred_check_branch
      %50 = sbr.rel (0) target = $region57
    $region56: #{tpu_custom_call.1} parent=1 // pred_region
      _
    $region57: #{tpu_custom_call.1} parent=1 // pred_fallthru
      _
    // Predicated region
    $region58: #{tpu_custom_call.1} parent=1 // pred_check
      _
    $region59: #{tpu_custom_call.1} parent=1 // pred_check_branch
      %52 = sbr.rel (0) target = $region61
    $region60: #{tpu_custom_call.1} parent=1 // pred_region
      _
    $region61: #{tpu_custom_call.1} parent=1 // pred_fallthru
      _
    // Predicated region
    $region62: #{tpu_custom_call.1} parent=1 // pred_check
      _
    $region63: #{tpu_custom_call.1} parent=1 // pred_check_branch
      %54 = sbr.rel (0) target = $region65
    $region64: #{tpu_custom_call.1} parent=1 // pred_region
      _
    $region65: #{tpu_custom_call.1} parent=1 // pred_fallthru
      _
    // Predicated region
    $region66: #{tpu_custom_call.1} parent=1 // pred_check
      _
    $region67: #{tpu_custom_call.1} parent=1 // pred_check_branch
      %56 = sbr.rel (0) target = $region69
    $region68: #{tpu_custom_call.1} parent=1 // pred_region
      _
    $region69: #{tpu_custom_call.1} parent=1 // pred_fallthru
      _
    %v57 = vld [vmem:[%s0] sm:$0xff]
    %v58 = vld [vmem:[%s0 + $0x8] sm:$0xff]
    %v59 = vlaneseq
    %v60 = vshrl.u32 %v59, 7
    %v61 = vadd.s32 %v60, 8
    %vm62 = vcmp.lt.s32.totalorder %v60, 0
    %v63 = vsub.s32 0, %v60
    %v64 = vsel %vm62, %v63, %v60
    %v65 = vshrl.u32 %v64, 1
    %v66 = vand.u32 %v64, 1
    %v67 = vsub.s32 0, %v66
    %v68 = vsel %vm62, %v67, %v66
    %vm69 = vcmp.lt.s32.totalorder %v61, 0
    %v70 = vsub.s32 0, %v61
    %v71 = vsel %vm69, %v70, %v61
    %v72 = vshrl.u32 %v71, 1
    %v73 = vand.u32 %v71, 1
    %v74 = vsub.s32 0, %v73
    %v75 = vsel %vm69, %v74, %v73
    %vm76 = vcmp.ne.s32.totalorder %v68, 0
    %vm77 = vcmp.ne.s32.totalorder %v75, 0
    %vm78 = vcmp.lt.s32.totalorder %v68, 0
    %vm79 = vcmp.lt.s32.totalorder %v75, 0
    %vm80 = vmand %vm78, %vm76
    %vm81 = vmand %vm79, %vm77
    %v82 = vadd.s32 %v68, 2
    %v83 = vadd.s32 %v75, 2
    %v84 = vsel %vm80, %v82, %v68
    %v85 = vsel %vm81, %v83, %v75
    %v86 = vlaneseq
    %v87 = vand.u32 %v86, 127
    %vm88 = vcmp.lt.s32.totalorder %v87, 0
    %v89 = vsub.s32 0, %v87
    %v90 = vsel %vm88, %v89, %v87
    %v91 = vshrl.u32 %v90, 1
    %v92 = vand.u32 %v90, 1
    %v93 = vsub.s32 0, %v92
    %v94 = vsel %vm88, %v93, %v92
    %vm95 = vcmp.ne.s32.totalorder %v94, 0
    %vm96 = vcmp.lt.s32.totalorder %v94, 0
    %vm97 = vmand %vm96, %vm95
    %v98 = vadd.s32 %v94, 2
    %v99 = vsel %vm97, %v98, %v94
    %vm100 = vcmp.eq.s32.totalorder %v84, %v99
    %vm101 = vcmp.eq.s32.totalorder %v85, %v99
    %v102 = vld [vmem:[%s1] sm:$0xff]
    %v103 = vld [vmem:[%s1 + $0x8] sm:$0xff]
    %v104 = vld [vmem:[%s1 + $0x10] sm:$0xff]
    %v105 = vld [vmem:[%s1 + $0x18] sm:$0xff]
    %v106 = vld [vmem:[%s4] sm:$0x1]
    %v108 = vperm.slane %v106, 0
    %vm110 = vcmask 261120
    %v112 = vsel %vm110, %v57, 0
    %v115 = vsel %vm110, %v58, 0
    %117 = vmatpush.msra.mxu0 0.0
    %118 = vmatpush.msra.mxu0 0.0
    %119 = vmatpush.msra.mxu0 0.0
    %120 = vmatpush.msra.mxu0 0.0
    %121 = vmatpush.msra.mxu0 0.0
    %122 = vmatpush.msra.mxu0 0.0
    %123 = vmatpush.msra.mxu0 0.0
    %124 = vmatpush.msra.mxu0 0.0
    %125 = vmatpush.msra.mxu0 0.0
    %126 = vmatpush.msra.mxu0 0.0
    %127 = vmatpush.msra.mxu0 0.0
    %128 = vmatpush.msra.mxu0 0.0
    %129 = vmatpush.msra.mxu0 %v105
    %130 = vmatpush.msra.mxu0 %v104
    %131 = vmatpush.msra.mxu0 %v103
    %132 = vmatpush.msra.mxu0 %v102
    %133 = vmatmul.f32.gmra.mxu0 %v112
    %v134 = vpop.f32.mrf.mxu0
    %v135 = vadd.f32 %v108, %v134
    %136 = vmatmul.f32.gmra.mxu0 %v115
    %v137 = vpop.f32.mrf.mxu0
    %v138 = vadd.f32 %v108, %v137
    %139 = vdwg.mxu0
    %v140 = vld [vmem:[%s2] sm:$0xff]
    %v141 = vld [vmem:[%s2 + $0x8] sm:$0xff]
    %v142 = vld [vmem:[%s2 + $0x10] sm:$0xff]
    %v143 = vld [vmem:[%s2 + $0x18] sm:$0xff]
    %v144 = vld [vmem:[%s5] sm:$0x1]
    %v146 = vperm.slane %v144, 0
    %148 = vmatpush.msra.mxu0 0.0
    %149 = vmatpush.msra.mxu0 0.0
    %150 = vmatpush.msra.mxu0 0.0
    %151 = vmatpush.msra.mxu0 0.0
    %152 = vmatpush.msra.mxu0 0.0
    %153 = vmatpush.msra.mxu0 0.0
    %154 = vmatpush.msra.mxu0 0.0
    %155 = vmatpush.msra.mxu0 0.0
    %156 = vmatpush.msra.mxu0 0.0
    %157 = vmatpush.msra.mxu0 0.0
    %158 = vmatpush.msra.mxu0 0.0
    %159 = vmatpush.msra.mxu0 0.0
    %160 = vmatpush.msra.mxu0 %v143
    %161 = vmatpush.msra.mxu0 %v142
    %162 = vmatpush.msra.mxu0 %v141
    %163 = vmatpush.msra.mxu0 %v140
    %164 = vmatmul.f32.gmra.mxu0 %v112
    %v165 = vpop.f32.mrf.mxu0
    %v166 = vadd.f32 %v146, %v165
    %167 = vmatmul.f32.gmra.mxu0 %v115
    %v168 = vpop.f32.mrf.mxu0
    %v169 = vadd.f32 %v146, %v168
    %170 = vdwg.mxu0
    %v171 = vld [vmem:[%s3] sm:$0xff]
    %v172 = vld [vmem:[%s3 + $0x8] sm:$0xff]
    %v173 = vld [vmem:[%s3 + $0x10] sm:$0xff]
    %v174 = vld [vmem:[%s3 + $0x18] sm:$0xff]
    %v175 = vld [vmem:[%s6] sm:$0x1]
    %v177 = vperm.slane %v175, 0
    %179 = vmatpush.msra.mxu0 0.0
    %180 = vmatpush.msra.mxu0 0.0
    %181 = vmatpush.msra.mxu0 0.0
    %182 = vmatpush.msra.mxu0 0.0
    %183 = vmatpush.msra.mxu0 0.0
    %184 = vmatpush.msra.mxu0 0.0
    %185 = vmatpush.msra.mxu0 0.0
    %186 = vmatpush.msra.mxu0 0.0
    %187 = vmatpush.msra.mxu0 0.0
    %188 = vmatpush.msra.mxu0 0.0
    %189 = vmatpush.msra.mxu0 0.0
    %190 = vmatpush.msra.mxu0 0.0
    %191 = vmatpush.msra.mxu0 %v174
    %192 = vmatpush.msra.mxu0 %v173
    %193 = vmatpush.msra.mxu0 %v172
    %194 = vmatpush.msra.mxu0 %v171
    %195 = vmatmul.f32.gmra.mxu0 %v112
    %v196 = vpop.f32.mrf.mxu0
    %v197 = vadd.f32 %v177, %v196
    %198 = vmatmul.f32.gmra.mxu0 %v115
    %v199 = vpop.f32.mrf.mxu0
    %v200 = vadd.f32 %v177, %v199
    %201 = vdwg.mxu0
    %vm202 = vcmask 64512
    %v204 = vsel %vm202, %v135, 0
    %v207 = vsel %vm202, %v138, 0
    %v210 = vsel %vm202, %v166, 0
    %v213 = vsel %vm202, %v169, 0
    %215 = vmatpush.xpose.msra.mxu0 0.0
    %216 = vmatpush.xpose.msra.mxu0 0.0
    %217 = vmatpush.xpose.msra.mxu0 0.0
    %218 = vmatpush.xpose.msra.mxu0 0.0
    %219 = vmatpush.xpose.msra.mxu0 0.0
    %220 = vmatpush.xpose.msra.mxu0 0.0
    %221 = vmatpush.xpose.msra.mxu0 0.0
    %222 = vmatpush.xpose.msra.mxu0 0.0
    %223 = vmatpush.xpose.msra.mxu0 0.0
    %224 = vmatpush.xpose.msra.mxu0 0.0
    %225 = vmatpush.xpose.msra.mxu0 0.0
    %226 = vmatpush.xpose.msra.mxu0 0.0
    %227 = vmatpush.xpose.msra.mxu0 0.0
    %228 = vmatpush.xpose.msra.mxu0 0.0
    %229 = vmatpush.xpose.msra.mxu0 %v213
    %230 = vmatpush.xpose.msra.mxu0 %v210
    %231 = vmatmul.f32.gmra.mxu0 %v204
    %v232 = vpop.f32.mrf.mxu0
    %v233 = vadd.f32 0.0, %v232
    %234 = vmatmul.f32.gmra.mxu0 %v207
    %v235 = vpop.f32.mrf.mxu0
    %v236 = vadd.f32 0.0, %v235
    %237 = vdwg.mxu0
    %v238 = vsel %vm100, %v233, -1e+30
    %v239 = vsel %vm101, %v236, -1e+30
    %vm240 = vcmask 130048
    %v241 = vsel %vm240, %v238, -inf
    %242 = vmax.xlane.f32.xlu0 %v241
    %v243 = vpop.xlane.xlu0 %242
    %v244 = vsel %vm240, %v239, -inf
    %245 = vmax.xlane.f32.xlu0 %v244
    %v246 = vpop.xlane.xlu0 %245
    %v247 = vsub.f32 %v238, %v243
    %v248 = vsub.f32 %v239, %v246
    %v249 = vmul.f32 %v247, 1.442695
    %v250 = vpow.pop %v249
    %v251 = vmul.f32 %v248, 1.442695
    %v252 = vpow.pop %v251
    %v253 = vsel %vm240, %v250, 0.0
    %254 = vadd.xlane.f32.xlu0 %v253
    %v255 = vpop.xlane.xlu0 %254
    %v256 = vsel %vm240, %v252, 0.0
    %257 = vadd.xlane.f32.xlu0 %v256
    %v258 = vpop.xlane.xlu0 %257
    %v259 = vrcp.pop %v255
    %v260 = vmul.f32 %v255, %v259
    %v261 = vsub.f32 1.0, %v260
    %v262 = vmul.f32 %v259, %v261
    %v263 = vadd.f32 %v259, %v262
    %vm264 = vweird.f32 %v255
    %vm265 = vweird.f32 %v259
    %vm266 = vmor %vm264, %vm265
    %v267 = vsel %vm266, %v259, %v263
    %v268 = vand.u32 2147483647, %v255
    %vm269 = vcmp.eq.f32.partialorder %v268, 8.507059e+37
    %v270 = vand.u32 %v255, 2147483648
    %v271 = vor.u32 1.1754944e-38, %v270
    %v272 = vsel %vm269, %v271, %v267
    %v273 = vrcp.pop %v258
    %v274 = vmul.f32 %v258, %v273
    %v275 = vsub.f32 1.0, %v274
    %v276 = vmul.f32 %v273, %v275
    %v277 = vadd.f32 %v273, %v276
    %vm278 = vweird.f32 %v258
    %vm279 = vweird.f32 %v273
    %vm280 = vmor %vm278, %vm279
    %v281 = vsel %vm280, %v273, %v277
    %v282 = vand.u32 2147483647, %v258
    %vm283 = vcmp.eq.f32.partialorder %v282, 8.507059e+37
    %v284 = vand.u32 %v258, 2147483648
    %v285 = vor.u32 1.1754944e-38, %v284
    %v286 = vsel %vm283, %v285, %v281
    %v287 = vmul.f32 %v250, %v272
    %v288 = vmul.f32 %v252, %v286
    %v290 = vsel %vm240, %v287, 0
    %v293 = vsel %vm240, %v288, 0
    %295 = vmatpush.msra.mxu0 0.0
    %296 = vmatpush.msra.mxu0 0.0
    %297 = vmatpush.msra.mxu0 0.0
    %298 = vmatpush.msra.mxu0 0.0
    %299 = vmatpush.msra.mxu0 0.0
    %300 = vmatpush.msra.mxu0 0.0
    %301 = vmatpush.msra.mxu0 0.0
    %302 = vmatpush.msra.mxu0 0.0
    %303 = vmatpush.msra.mxu0 0.0
    %304 = vmatpush.msra.mxu0 0.0
    %305 = vmatpush.msra.mxu0 0.0
    %306 = vmatpush.msra.mxu0 0.0
    %307 = vmatpush.msra.mxu0 0.0
    %308 = vmatpush.msra.mxu0 0.0
    %309 = vmatpush.msra.mxu0 %v200
    %310 = vmatpush.msra.mxu0 %v197
    %311 = vmatmul.f32.gmra.mxu0 %v290
    %v312 = vpop.f32.mrf.mxu0
    %v313 = vadd.f32 0.0, %v312
    %314 = vmatmul.f32.gmra.mxu0 %v293
    %v315 = vpop.f32.mrf.mxu0
    %v316 = vadd.f32 0.0, %v315
    %317 = vdwg.mxu0
    %v318 = vld [vmem:[%s7] sm:$0xff]
    %s319 = scalar_lea.vmem %s1, 32
    %v320 = vld [vmem:[%s319] sm:$0xff]
    %v321 = vld [vmem:[%s319 + $0x8] sm:$0xff]
    %v322 = vld [vmem:[%s319 + $0x10] sm:$0xff]
    %v323 = vld [vmem:[%s319 + $0x18] sm:$0xff]
    %s324 = scalar_lea.vmem %s4, 1
    %v325 = vld [vmem:[%s324] sm:$0x1]
    %v327 = vperm.slane %v325, 0
    %329 = vmatpush.msra.mxu0 0.0
    %330 = vmatpush.msra.mxu0 0.0
    %331 = vmatpush.msra.mxu0 0.0
    %332 = vmatpush.msra.mxu0 0.0
    %333 = vmatpush.msra.mxu0 0.0
    %334 = vmatpush.msra.mxu0 0.0
    %335 = vmatpush.msra.mxu0 0.0
    %336 = vmatpush.msra.mxu0 0.0
    %337 = vmatpush.msra.mxu0 0.0
    %338 = vmatpush.msra.mxu0 0.0
    %339 = vmatpush.msra.mxu0 0.0
    %340 = vmatpush.msra.mxu0 0.0
    %341 = vmatpush.msra.mxu0 %v323
    %342 = vmatpush.msra.mxu0 %v322
    %343 = vmatpush.msra.mxu0 %v321
    %344 = vmatpush.msra.mxu0 %v320
    %345 = vmatmul.f32.gmra.mxu0 %v112
    %v346 = vpop.f32.mrf.mxu0
    %v347 = vadd.f32 %v327, %v346
    %348 = vmatmul.f32.gmra.mxu0 %v115
    %v349 = vpop.f32.mrf.mxu0
    %v350 = vadd.f32 %v327, %v349
    %351 = vdwg.mxu0
    %s352 = scalar_lea.vmem %s2, 32
    %v353 = vld [vmem:[%s352] sm:$0xff]
    %v354 = vld [vmem:[%s352 + $0x8] sm:$0xff]
    %v355 = vld [vmem:[%s352 + $0x10] sm:$0xff]
    %v356 = vld [vmem:[%s352 + $0x18] sm:$0xff]
    %s357 = scalar_lea.vmem %s5, 1
    %v358 = vld [vmem:[%s357] sm:$0x1]
    %v360 = vperm.slane %v358, 0
    %362 = vmatpush.msra.mxu0 0.0
    %363 = vmatpush.msra.mxu0 0.0
    %364 = vmatpush.msra.mxu0 0.0
    %365 = vmatpush.msra.mxu0 0.0
    %366 = vmatpush.msra.mxu0 0.0
    %367 = vmatpush.msra.mxu0 0.0
    %368 = vmatpush.msra.mxu0 0.0
    %369 = vmatpush.msra.mxu0 0.0
    %370 = vmatpush.msra.mxu0 0.0
    %371 = vmatpush.msra.mxu0 0.0
    %372 = vmatpush.msra.mxu0 0.0
    %373 = vmatpush.msra.mxu0 0.0
    %374 = vmatpush.msra.mxu0 %v356
    %375 = vmatpush.msra.mxu0 %v355
    %376 = vmatpush.msra.mxu0 %v354
    %377 = vmatpush.msra.mxu0 %v353
    %378 = vmatmul.f32.gmra.mxu0 %v112
    %v379 = vpop.f32.mrf.mxu0
    %v380 = vadd.f32 %v360, %v379
    %381 = vmatmul.f32.gmra.mxu0 %v115
    %v382 = vpop.f32.mrf.mxu0
    %v383 = vadd.f32 %v360, %v382
    %384 = vdwg.mxu0
    %s385 = scalar_lea.vmem %s3, 32
    %v386 = vld [vmem:[%s385] sm:$0xff]
    %v387 = vld [vmem:[%s385 + $0x8] sm:$0xff]
    %v388 = vld [vmem:[%s385 + $0x10] sm:$0xff]
    %v389 = vld [vmem:[%s385 + $0x18] sm:$0xff]
    %s390 = scalar_lea.vmem %s6, 1
    %v391 = vld [vmem:[%s390] sm:$0x1]
    %v393 = vperm.slane %v391, 0
    %395 = vmatpush.msra.mxu0 0.0
    %396 = vmatpush.msra.mxu0 0.0
    %397 = vmatpush.msra.mxu0 0.0
    %398 = vmatpush.msra.mxu0 0.0
    %399 = vmatpush.msra.mxu0 0.0
    %400 = vmatpush.msra.mxu0 0.0
    %401 = vmatpush.msra.mxu0 0.0
    %402 = vmatpush.msra.mxu0 0.0
    %403 = vmatpush.msra.mxu0 0.0
    %404 = vmatpush.msra.mxu0 0.0
    %405 = vmatpush.msra.mxu0 0.0
    %406 = vmatpush.msra.mxu0 0.0
    %407 = vmatpush.msra.mxu0 %v389
    %408 = vmatpush.msra.mxu0 %v388
    %409 = vmatpush.msra.mxu0 %v387
    %410 = vmatpush.msra.mxu0 %v386
    %411 = vmatmul.f32.gmra.mxu0 %v112
    %v412 = vpop.f32.mrf.mxu0
    %v413 = vadd.f32 %v393, %v412
    %414 = vmatmul.f32.gmra.mxu0 %v115
    %v415 = vpop.f32.mrf.mxu0
    %v416 = vadd.f32 %v393, %v415
    %417 = vdwg.mxu0
    %v419 = vsel %vm202, %v347, 0
    %v422 = vsel %vm202, %v350, 0
    %v425 = vsel %vm202, %v380, 0
    %v428 = vsel %vm202, %v383, 0
    %430 = vmatpush.xpose.msra.mxu0 0.0
    %431 = vmatpush.xpose.msra.mxu0 0.0
    %432 = vmatpush.xpose.msra.mxu0 0.0
    %433 = vmatpush.xpose.msra.mxu0 0.0
    %434 = vmatpush.xpose.msra.mxu0 0.0
    %435 = vmatpush.xpose.msra.mxu0 0.0
    %436 = vmatpush.xpose.msra.mxu0 0.0
    %437 = vmatpush.xpose.msra.mxu0 0.0
    %438 = vmatpush.xpose.msra.mxu0 0.0
    %439 = vmatpush.xpose.msra.mxu0 0.0
    %440 = vmatpush.xpose.msra.mxu0 0.0
    %441 = vmatpush.xpose.msra.mxu0 0.0
    %442 = vmatpush.xpose.msra.mxu0 0.0
    %443 = vmatpush.xpose.msra.mxu0 0.0
    %444 = vmatpush.xpose.msra.mxu0 %v428
    %445 = vmatpush.xpose.msra.mxu0 %v425
    %446 = vmatmul.f32.gmra.mxu0 %v419
    %v447 = vpop.f32.mrf.mxu0
    %v448 = vadd.f32 0.0, %v447
    %449 = vmatmul.f32.gmra.mxu0 %v422
    %v450 = vpop.f32.mrf.mxu0
    %v451 = vadd.f32 0.0, %v450
    %452 = vdwg.mxu0
    %v453 = vsel %vm100, %v448, -1e+30
    %v454 = vsel %vm101, %v451, -1e+30
    %v455 = vsel %vm240, %v453, -inf
    %456 = vmax.xlane.f32.xlu0 %v455
    %v457 = vpop.xlane.xlu0 %456
    %v458 = vsel %vm240, %v454, -inf
    %459 = vmax.xlane.f32.xlu0 %v458
    %v460 = vpop.xlane.xlu0 %459
    %v461 = vsub.f32 %v453, %v457
    %v462 = vsub.f32 %v454, %v460
    %v463 = vmul.f32 %v461, 1.442695
    %v464 = vpow.pop %v463
    %v465 = vmul.f32 %v462, 1.442695
    %v466 = vpow.pop %v465
    %v467 = vsel %vm240, %v464, 0.0
    %468 = vadd.xlane.f32.xlu0 %v467
    %v469 = vpop.xlane.xlu0 %468
    %v470 = vsel %vm240, %v466, 0.0
    %471 = vadd.xlane.f32.xlu0 %v470
    %v472 = vpop.xlane.xlu0 %471
    %v473 = vrcp.pop %v469
    %v474 = vmul.f32 %v469, %v473
    %v475 = vsub.f32 1.0, %v474
    %v476 = vmul.f32 %v473, %v475
    %v477 = vadd.f32 %v473, %v476
    %vm478 = vweird.f32 %v469
    %vm479 = vweird.f32 %v473
    %vm480 = vmor %vm478, %vm479
    %v481 = vsel %vm480, %v473, %v477
    %v482 = vand.u32 2147483647, %v469
    %vm483 = vcmp.eq.f32.partialorder %v482, 8.507059e+37
    %v484 = vand.u32 %v469, 2147483648
    %v485 = vor.u32 1.1754944e-38, %v484
    %v486 = vsel %vm483, %v485, %v481
    %v487 = vrcp.pop %v472
    %v488 = vmul.f32 %v472, %v487
    %v489 = vsub.f32 1.0, %v488
    %v490 = vmul.f32 %v487, %v489
    %v491 = vadd.f32 %v487, %v490
    %vm492 = vweird.f32 %v472
    %vm493 = vweird.f32 %v487
    %vm494 = vmor %vm492, %vm493
    %v495 = vsel %vm494, %v487, %v491
    %v496 = vand.u32 2147483647, %v472
    %vm497 = vcmp.eq.f32.partialorder %v496, 8.507059e+37
    %v498 = vand.u32 %v472, 2147483648
    %v499 = vor.u32 1.1754944e-38, %v498
    %v500 = vsel %vm497, %v499, %v495
    %v501 = vmul.f32 %v464, %v486
    %v502 = vmul.f32 %v466, %v500
    %v504 = vsel %vm240, %v501, 0
    %v507 = vsel %vm240, %v502, 0
    %509 = vmatpush.msra.mxu0 0.0
    %510 = vmatpush.msra.mxu0 0.0
    %511 = vmatpush.msra.mxu0 0.0
    %512 = vmatpush.msra.mxu0 0.0
    %513 = vmatpush.msra.mxu0 0.0
    %514 = vmatpush.msra.mxu0 0.0
    %515 = vmatpush.msra.mxu0 0.0
    %516 = vmatpush.msra.mxu0 0.0
    %517 = vmatpush.msra.mxu0 0.0
    %518 = vmatpush.msra.mxu0 0.0
    %519 = vmatpush.msra.mxu0 0.0
    %520 = vmatpush.msra.mxu0 0.0
    %521 = vmatpush.msra.mxu0 0.0
    %522 = vmatpush.msra.mxu0 0.0
    %523 = vmatpush.msra.mxu0 %v416
    %524 = vmatpush.msra.mxu0 %v413
    %525 = vmatmul.f32.gmra.mxu0 %v504
    %v526 = vpop.f32.mrf.mxu0
    %v527 = vadd.f32 0.0, %v526
    %528 = vmatmul.f32.gmra.mxu0 %v507
    %v529 = vpop.f32.mrf.mxu0
    %v530 = vadd.f32 0.0, %v529
    %531 = vdwg.mxu0
    %s532 = scalar_lea.vmem %s7, 8
    %v533 = vld [vmem:[%s532] sm:$0xff]
    %v535 = vsel %vm202, %v527, 0
    %v538 = vsel %vm202, %v530, 0
    %540 = vmatpush.msra.mxu0 0.0
    %541 = vmatpush.msra.mxu0 0.0
    %542 = vmatpush.msra.mxu0 0.0
    %543 = vmatpush.msra.mxu0 0.0
    %544 = vmatpush.msra.mxu0 0.0
    %545 = vmatpush.msra.mxu0 0.0
    %546 = vmatpush.msra.mxu0 0.0
    %547 = vmatpush.msra.mxu0 0.0
    %548 = vmatpush.msra.mxu0 0.0
    %549 = vmatpush.msra.mxu0 0.0
    %550 = vmatpush.msra.mxu0 0.0
    %551 = vmatpush.msra.mxu0 0.0
    %552 = vmatpush.msra.mxu0 0.0
    %553 = vmatpush.msra.mxu0 0.0
    %554 = vmatpush.msra.mxu0 0.0
    %555 = vmatpush.msra.mxu0 %v533
    %556 = vmatmul.f32.gmra.mxu0 %v535
    %v557 = vpop.f32.mrf.mxu0
    %v558 = vadd.f32 0.0, %v557
    %559 = vmatmul.f32.gmra.mxu0 %v538
    %v560 = vpop.f32.mrf.mxu0
    %v561 = vadd.f32 0.0, %v560
    %562 = vdwg.mxu0
    %v564 = vsel %vm202, %v313, 0
    %v567 = vsel %vm202, %v316, 0
    %569 = vmatpush.msra.mxu0 0.0
    %570 = vmatpush.msra.mxu0 0.0
    %571 = vmatpush.msra.mxu0 0.0
    %572 = vmatpush.msra.mxu0 0.0
    %573 = vmatpush.msra.mxu0 0.0
    %574 = vmatpush.msra.mxu0 0.0
    %575 = vmatpush.msra.mxu0 0.0
    %576 = vmatpush.msra.mxu0 0.0
    %577 = vmatpush.msra.mxu0 0.0
    %578 = vmatpush.msra.mxu0 0.0
    %579 = vmatpush.msra.mxu0 0.0
    %580 = vmatpush.msra.mxu0 0.0
    %581 = vmatpush.msra.mxu0 0.0
    %582 = vmatpush.msra.mxu0 0.0
    %583 = vmatpush.msra.mxu0 0.0
    %584 = vmatpush.msra.mxu0 %v318
    %585 = vmatmul.f32.gmra.mxu0 %v564
    %v586 = vpop.f32.mrf.mxu0
    %v587 = vadd.f32 %v558, %v586
    %588 = vmatmul.f32.gmra.mxu0 %v567
    %v589 = vpop.f32.mrf.mxu0
    %v590 = vadd.f32 %v561, %v589
    %591 = vdwg.mxu0
    %s592 = scalar_lea.vmem %s1, 64
    %v593 = vld [vmem:[%s592] sm:$0xff]
    %v594 = vld [vmem:[%s592 + $0x8] sm:$0xff]
    %v595 = vld [vmem:[%s592 + $0x10] sm:$0xff]
    %v596 = vld [vmem:[%s592 + $0x18] sm:$0xff]
    %s597 = scalar_lea.vmem %s4, 2
    %v598 = vld [vmem:[%s597] sm:$0x1]
    %v600 = vperm.slane %v598, 0
    %602 = vmatpush.msra.mxu0 0.0
    %603 = vmatpush.msra.mxu0 0.0
    %604 = vmatpush.msra.mxu0 0.0
    %605 = vmatpush.msra.mxu0 0.0
    %606 = vmatpush.msra.mxu0 0.0
    %607 = vmatpush.msra.mxu0 0.0
    %608 = vmatpush.msra.mxu0 0.0
    %609 = vmatpush.msra.mxu0 0.0
    %610 = vmatpush.msra.mxu0 0.0
    %611 = vmatpush.msra.mxu0 0.0
    %612 = vmatpush.msra.mxu0 0.0
    %613 = vmatpush.msra.mxu0 0.0
    %614 = vmatpush.msra.mxu0 %v596
    %615 = vmatpush.msra.mxu0 %v595
    %616 = vmatpush.msra.mxu0 %v594
    %617 = vmatpush.msra.mxu0 %v593
    %618 = vmatmul.f32.gmra.mxu0 %v112
    %v619 = vpop.f32.mrf.mxu0
    %v620 = vadd.f32 %v600, %v619
    %621 = vmatmul.f32.gmra.mxu0 %v115
    %v622 = vpop.f32.mrf.mxu0
    %v623 = vadd.f32 %v600, %v622
    %624 = vdwg.mxu0
    %s625 = scalar_lea.vmem %s2, 64
    %v626 = vld [vmem:[%s625] sm:$0xff]
    %v627 = vld [vmem:[%s625 + $0x8] sm:$0xff]
    %v628 = vld [vmem:[%s625 + $0x10] sm:$0xff]
    %v629 = vld [vmem:[%s625 + $0x18] sm:$0xff]
    %s630 = scalar_lea.vmem %s5, 2
    %v631 = vld [vmem:[%s630] sm:$0x1]
    %v633 = vperm.slane %v631, 0
    %635 = vmatpush.msra.mxu0 0.0
    %636 = vmatpush.msra.mxu0 0.0
    %637 = vmatpush.msra.mxu0 0.0
    %638 = vmatpush.msra.mxu0 0.0
    %639 = vmatpush.msra.mxu0 0.0
    %640 = vmatpush.msra.mxu0 0.0
    %641 = vmatpush.msra.mxu0 0.0
    %642 = vmatpush.msra.mxu0 0.0
    %643 = vmatpush.msra.mxu0 0.0
    %644 = vmatpush.msra.mxu0 0.0
    %645 = vmatpush.msra.mxu0 0.0
    %646 = vmatpush.msra.mxu0 0.0
    %647 = vmatpush.msra.mxu0 %v629
    %648 = vmatpush.msra.mxu0 %v628
    %649 = vmatpush.msra.mxu0 %v627
    %650 = vmatpush.msra.mxu0 %v626
    %651 = vmatmul.f32.gmra.mxu0 %v112
    %v652 = vpop.f32.mrf.mxu0
    %v653 = vadd.f32 %v633, %v652
    %654 = vmatmul.f32.gmra.mxu0 %v115
    %v655 = vpop.f32.mrf.mxu0
    %v656 = vadd.f32 %v633, %v655
    %657 = vdwg.mxu0
    %s658 = scalar_lea.vmem %s3, 64
    %v659 = vld [vmem:[%s658] sm:$0xff]
    %v660 = vld [vmem:[%s658 + $0x8] sm:$0xff]
    %v661 = vld [vmem:[%s658 + $0x10] sm:$0xff]
    %v662 = vld [vmem:[%s658 + $0x18] sm:$0xff]
    %s663 = scalar_lea.vmem %s6, 2
    %v664 = vld [vmem:[%s663] sm:$0x1]
    %v666 = vperm.slane %v664, 0
    %668 = vmatpush.msra.mxu0 0.0
    %669 = vmatpush.msra.mxu0 0.0
    %670 = vmatpush.msra.mxu0 0.0
    %671 = vmatpush.msra.mxu0 0.0
    %672 = vmatpush.msra.mxu0 0.0
    %673 = vmatpush.msra.mxu0 0.0
    %674 = vmatpush.msra.mxu0 0.0
    %675 = vmatpush.msra.mxu0 0.0
    %676 = vmatpush.msra.mxu0 0.0
    %677 = vmatpush.msra.mxu0 0.0
    %678 = vmatpush.msra.mxu0 0.0
    %679 = vmatpush.msra.mxu0 0.0
    %680 = vmatpush.msra.mxu0 %v662
    %681 = vmatpush.msra.mxu0 %v661
    %682 = vmatpush.msra.mxu0 %v660
    %683 = vmatpush.msra.mxu0 %v659
    %684 = vmatmul.f32.gmra.mxu0 %v112
    %v685 = vpop.f32.mrf.mxu0
    %v686 = vadd.f32 %v666, %v685
    %687 = vmatmul.f32.gmra.mxu0 %v115
    %v688 = vpop.f32.mrf.mxu0
    %v689 = vadd.f32 %v666, %v688
    %690 = vdwg.mxu0
    %v692 = vsel %vm202, %v620, 0
    %v695 = vsel %vm202, %v623, 0
    %v698 = vsel %vm202, %v653, 0
    %v701 = vsel %vm202, %v656, 0
    %703 = vmatpush.xpose.msra.mxu0 0.0
    %704 = vmatpush.xpose.msra.mxu0 0.0
    %705 = vmatpush.xpose.msra.mxu0 0.0
    %706 = vmatpush.xpose.msra.mxu0 0.0
    %707 = vmatpush.xpose.msra.mxu0 0.0
    %708 = vmatpush.xpose.msra.mxu0 0.0
    %709 = vmatpush.xpose.msra.mxu0 0.0
    %710 = vmatpush.xpose.msra.mxu0 0.0
    %711 = vmatpush.xpose.msra.mxu0 0.0
    %712 = vmatpush.xpose.msra.mxu0 0.0
    %713 = vmatpush.xpose.msra.mxu0 0.0
    %714 = vmatpush.xpose.msra.mxu0 0.0
    %715 = vmatpush.xpose.msra.mxu0 0.0
    %716 = vmatpush.xpose.msra.mxu0 0.0
    %717 = vmatpush.xpose.msra.mxu0 %v701
    %718 = vmatpush.xpose.msra.mxu0 %v698
    %719 = vmatmul.f32.gmra.mxu0 %v692
    %v720 = vpop.f32.mrf.mxu0
    %v721 = vadd.f32 0.0, %v720
    %722 = vmatmul.f32.gmra.mxu0 %v695
    %v723 = vpop.f32.mrf.mxu0
    %v724 = vadd.f32 0.0, %v723
    %725 = vdwg.mxu0
    %v726 = vsel %vm100, %v721, -1e+30
    %v727 = vsel %vm101, %v724, -1e+30
    %v728 = vsel %vm240, %v726, -inf
    %729 = vmax.xlane.f32.xlu0 %v728
    %v730 = vpop.xlane.xlu0 %729
    %v731 = vsel %vm240, %v727, -inf
    %732 = vmax.xlane.f32.xlu0 %v731
    %v733 = vpop.xlane.xlu0 %732
    %v734 = vsub.f32 %v726, %v730
    %v735 = vsub.f32 %v727, %v733
    %v736 = vmul.f32 %v734, 1.442695
    %v737 = vpow.pop %v736
    %v738 = vmul.f32 %v735, 1.442695
    %v739 = vpow.pop %v738
    %v740 = vsel %vm240, %v737, 0.0
    %741 = vadd.xlane.f32.xlu0 %v740
    %v742 = vpop.xlane.xlu0 %741
    %v743 = vsel %vm240, %v739, 0.0
    %744 = vadd.xlane.f32.xlu0 %v743
    %v745 = vpop.xlane.xlu0 %744
    %v746 = vrcp.pop %v742
    %v747 = vmul.f32 %v742, %v746
    %v748 = vsub.f32 1.0, %v747
    %v749 = vmul.f32 %v746, %v748
    %v750 = vadd.f32 %v746, %v749
    %vm751 = vweird.f32 %v742
    %vm752 = vweird.f32 %v746
    %vm753 = vmor %vm751, %vm752
    %v754 = vsel %vm753, %v746, %v750
    %v755 = vand.u32 2147483647, %v742
    %vm756 = vcmp.eq.f32.partialorder %v755, 8.507059e+37
    %v757 = vand.u32 %v742, 2147483648
    %v758 = vor.u32 1.1754944e-38, %v757
    %v759 = vsel %vm756, %v758, %v754
    %v760 = vrcp.pop %v745
    %v761 = vmul.f32 %v745, %v760
    %v762 = vsub.f32 1.0, %v761
    %v763 = vmul.f32 %v760, %v762
    %v764 = vadd.f32 %v760, %v763
    %vm765 = vweird.f32 %v745
    %vm766 = vweird.f32 %v760
    %vm767 = vmor %vm765, %vm766
    %v768 = vsel %vm767, %v760, %v764
    %v769 = vand.u32 2147483647, %v745
    %vm770 = vcmp.eq.f32.partialorder %v769, 8.507059e+37
    %v771 = vand.u32 %v745, 2147483648
    %v772 = vor.u32 1.1754944e-38, %v771
    %v773 = vsel %vm770, %v772, %v768
    %v774 = vmul.f32 %v737, %v759
    %v775 = vmul.f32 %v739, %v773
    %v777 = vsel %vm240, %v774, 0
    %v780 = vsel %vm240, %v775, 0
    %782 = vmatpush.msra.mxu0 0.0
    %783 = vmatpush.msra.mxu0 0.0
    %784 = vmatpush.msra.mxu0 0.0
    %785 = vmatpush.msra.mxu0 0.0
    %786 = vmatpush.msra.mxu0 0.0
    %787 = vmatpush.msra.mxu0 0.0
    %788 = vmatpush.msra.mxu0 0.0
    %789 = vmatpush.msra.mxu0 0.0
    %790 = vmatpush.msra.mxu0 0.0
    %791 = vmatpush.msra.mxu0 0.0
    %792 = vmatpush.msra.mxu0 0.0
    %793 = vmatpush.msra.mxu0 0.0
    %794 = vmatpush.msra.mxu0 0.0
    %795 = vmatpush.msra.mxu0 0.0
    %796 = vmatpush.msra.mxu0 %v689
    %797 = vmatpush.msra.mxu0 %v686
    %798 = vmatmul.f32.gmra.mxu0 %v777
    %v799 = vpop.f32.mrf.mxu0
    %v800 = vadd.f32 0.0, %v799
    %801 = vmatmul.f32.gmra.mxu0 %v780
    %v802 = vpop.f32.mrf.mxu0
    %v803 = vadd.f32 0.0, %v802
    %804 = vdwg.mxu0
    %s805 = scalar_lea.vmem %s7, 16
    %v806 = vld [vmem:[%s805] sm:$0xff]
    %v808 = vsel %vm202, %v800, 0
    %v811 = vsel %vm202, %v803, 0
    %813 = vmatpush.msra.mxu0 0.0
    %814 = vmatpush.msra.mxu0 0.0
    %815 = vmatpush.msra.mxu0 0.0
    %816 = vmatpush.msra.mxu0 0.0
    %817 = vmatpush.msra.mxu0 0.0
    %818 = vmatpush.msra.mxu0 0.0
    %819 = vmatpush.msra.mxu0 0.0
    %820 = vmatpush.msra.mxu0 0.0
    %821 = vmatpush.msra.mxu0 0.0
    %822 = vmatpush.msra.mxu0 0.0
    %823 = vmatpush.msra.mxu0 0.0
    %824 = vmatpush.msra.mxu0 0.0
    %825 = vmatpush.msra.mxu0 0.0
    %826 = vmatpush.msra.mxu0 0.0
    %827 = vmatpush.msra.mxu0 0.0
    %828 = vmatpush.msra.mxu0 %v806
    %829 = vmatmul.f32.gmra.mxu0 %v808
    %v830 = vpop.f32.mrf.mxu0
    %v831 = vadd.f32 0.0, %v830
    %832 = vmatmul.f32.gmra.mxu0 %v811
    %v833 = vpop.f32.mrf.mxu0
    %v834 = vadd.f32 0.0, %v833
    %835 = vdwg.mxu0
    %v836 = vadd.f32 %v587, %v831
    %v837 = vadd.f32 %v590, %v834
    %s838 = scalar_lea.vmem %s1, 96
    %v839 = vld [vmem:[%s838] sm:$0xff]
    %v840 = vld [vmem:[%s838 + $0x8] sm:$0xff]
    %v841 = vld [vmem:[%s838 + $0x10] sm:$0xff]
    %v842 = vld [vmem:[%s838 + $0x18] sm:$0xff]
    %s843 = scalar_lea.vmem %s4, 3
    %v844 = vld [vmem:[%s843] sm:$0x1]
    %v846 = vperm.slane %v844, 0
    %848 = vmatpush.msra.mxu0 0.0
    %849 = vmatpush.msra.mxu0 0.0
    %850 = vmatpush.msra.mxu0 0.0
    %851 = vmatpush.msra.mxu0 0.0
    %852 = vmatpush.msra.mxu0 0.0
    %853 = vmatpush.msra.mxu0 0.0
    %854 = vmatpush.msra.mxu0 0.0
    %855 = vmatpush.msra.mxu0 0.0
    %856 = vmatpush.msra.mxu0 0.0
    %857 = vmatpush.msra.mxu0 0.0
    %858 = vmatpush.msra.mxu0 0.0
    %859 = vmatpush.msra.mxu0 0.0
    %860 = vmatpush.msra.mxu0 %v842
    %861 = vmatpush.msra.mxu0 %v841
    %862 = vmatpush.msra.mxu0 %v840
    %863 = vmatpush.msra.mxu0 %v839
    %864 = vmatmul.f32.gmra.mxu0 %v112
    %v865 = vpop.f32.mrf.mxu0
    %v866 = vadd.f32 %v846, %v865
    %867 = vmatmul.f32.gmra.mxu0 %v115
    %v868 = vpop.f32.mrf.mxu0
    %v869 = vadd.f32 %v846, %v868
    %870 = vdwg.mxu0
    %s871 = scalar_lea.vmem %s2, 96
    %v872 = vld [vmem:[%s871] sm:$0xff]
    %v873 = vld [vmem:[%s871 + $0x8] sm:$0xff]
    %v874 = vld [vmem:[%s871 + $0x10] sm:$0xff]
    %v875 = vld [vmem:[%s871 + $0x18] sm:$0xff]
    %s876 = scalar_lea.vmem %s5, 3
    %v877 = vld [vmem:[%s876] sm:$0x1]
    %v879 = vperm.slane %v877, 0
    %881 = vmatpush.msra.mxu0 0.0
    %882 = vmatpush.msra.mxu0 0.0
    %883 = vmatpush.msra.mxu0 0.0
    %884 = vmatpush.msra.mxu0 0.0
    %885 = vmatpush.msra.mxu0 0.0
    %886 = vmatpush.msra.mxu0 0.0
    %887 = vmatpush.msra.mxu0 0.0
    %888 = vmatpush.msra.mxu0 0.0
    %889 = vmatpush.msra.mxu0 0.0
    %890 = vmatpush.msra.mxu0 0.0
    %891 = vmatpush.msra.mxu0 0.0
    %892 = vmatpush.msra.mxu0 0.0
    %893 = vmatpush.msra.mxu0 %v875
    %894 = vmatpush.msra.mxu0 %v874
    %895 = vmatpush.msra.mxu0 %v873
    %896 = vmatpush.msra.mxu0 %v872
    %897 = vmatmul.f32.gmra.mxu0 %v112
    %v898 = vpop.f32.mrf.mxu0
    %v899 = vadd.f32 %v879, %v898
    %900 = vmatmul.f32.gmra.mxu0 %v115
    %v901 = vpop.f32.mrf.mxu0
    %v902 = vadd.f32 %v879, %v901
    %903 = vdwg.mxu0
    %s904 = scalar_lea.vmem %s3, 96
    %v905 = vld [vmem:[%s904] sm:$0xff]
    %v906 = vld [vmem:[%s904 + $0x8] sm:$0xff]
    %v907 = vld [vmem:[%s904 + $0x10] sm:$0xff]
    %v908 = vld [vmem:[%s904 + $0x18] sm:$0xff]
    %s909 = scalar_lea.vmem %s6, 3
    %v910 = vld [vmem:[%s909] sm:$0x1]
    %v912 = vperm.slane %v910, 0
    %914 = vmatpush.msra.mxu0 0.0
    %915 = vmatpush.msra.mxu0 0.0
    %916 = vmatpush.msra.mxu0 0.0
    %917 = vmatpush.msra.mxu0 0.0
    %918 = vmatpush.msra.mxu0 0.0
    %919 = vmatpush.msra.mxu0 0.0
    %920 = vmatpush.msra.mxu0 0.0
    %921 = vmatpush.msra.mxu0 0.0
    %922 = vmatpush.msra.mxu0 0.0
    %923 = vmatpush.msra.mxu0 0.0
    %924 = vmatpush.msra.mxu0 0.0
    %925 = vmatpush.msra.mxu0 0.0
    %926 = vmatpush.msra.mxu0 %v908
    %927 = vmatpush.msra.mxu0 %v907
    %928 = vmatpush.msra.mxu0 %v906
    %929 = vmatpush.msra.mxu0 %v905
    %930 = vmatmul.f32.gmra.mxu0 %v112
    %v931 = vpop.f32.mrf.mxu0
    %v932 = vadd.f32 %v912, %v931
    %933 = vmatmul.f32.gmra.mxu0 %v115
    %v934 = vpop.f32.mrf.mxu0
    %v935 = vadd.f32 %v912, %v934
    %936 = vdwg.mxu0
    %v938 = vsel %vm202, %v866, 0
    %v941 = vsel %vm202, %v869, 0
    %v944 = vsel %vm202, %v899, 0
    %v947 = vsel %vm202, %v902, 0
    %949 = vmatpush.xpose.msra.mxu0 0.0
    %950 = vmatpush.xpose.msra.mxu0 0.0
    %951 = vmatpush.xpose.msra.mxu0 0.0
    %952 = vmatpush.xpose.msra.mxu0 0.0
    %953 = vmatpush.xpose.msra.mxu0 0.0
    %954 = vmatpush.xpose.msra.mxu0 0.0
    %955 = vmatpush.xpose.msra.mxu0 0.0
    %956 = vmatpush.xpose.msra.mxu0 0.0
    %957 = vmatpush.xpose.msra.mxu0 0.0
    %958 = vmatpush.xpose.msra.mxu0 0.0
    %959 = vmatpush.xpose.msra.mxu0 0.0
    %960 = vmatpush.xpose.msra.mxu0 0.0
    %961 = vmatpush.xpose.msra.mxu0 0.0
    %962 = vmatpush.xpose.msra.mxu0 0.0
    %963 = vmatpush.xpose.msra.mxu0 %v947
    %964 = vmatpush.xpose.msra.mxu0 %v944
    %965 = vmatmul.f32.gmra.mxu0 %v938
    %v966 = vpop.f32.mrf.mxu0
    %v967 = vadd.f32 0.0, %v966
    %968 = vmatmul.f32.gmra.mxu0 %v941
    %v969 = vpop.f32.mrf.mxu0
    %v970 = vadd.f32 0.0, %v969
    %971 = vdwg.mxu0
    %v972 = vsel %vm100, %v967, -1e+30
    %v973 = vsel %vm101, %v970, -1e+30
    %v974 = vsel %vm240, %v972, -inf
    %975 = vmax.xlane.f32.xlu0 %v974
    %v976 = vpop.xlane.xlu0 %975
    %v977 = vsel %vm240, %v973, -inf
    %978 = vmax.xlane.f32.xlu0 %v977
    %v979 = vpop.xlane.xlu0 %978
    %v980 = vsub.f32 %v972, %v976
    %v981 = vsub.f32 %v973, %v979
    %v982 = vmul.f32 %v980, 1.442695
    %v983 = vpow.pop %v982
    %v984 = vmul.f32 %v981, 1.442695
    %v985 = vpow.pop %v984
    %v986 = vsel %vm240, %v983, 0.0
    %987 = vadd.xlane.f32.xlu0 %v986
    %v988 = vpop.xlane.xlu0 %987
    %v989 = vsel %vm240, %v985, 0.0
    %990 = vadd.xlane.f32.xlu0 %v989
    %v991 = vpop.xlane.xlu0 %990
    %v992 = vrcp.pop %v988
    %v993 = vmul.f32 %v988, %v992
    %v994 = vsub.f32 1.0, %v993
    %v995 = vmul.f32 %v992, %v994
    %v996 = vadd.f32 %v992, %v995
    %vm997 = vweird.f32 %v988
    %vm998 = vweird.f32 %v992
    %vm999 = vmor %vm997, %vm998
    %v1000 = vsel %vm999, %v992, %v996
    %v1001 = vand.u32 2147483647, %v988
    %vm1002 = vcmp.eq.f32.partialorder %v1001, 8.507059e+37
    %v1003 = vand.u32 %v988, 2147483648
    %v1004 = vor.u32 1.1754944e-38, %v1003
    %v1005 = vsel %vm1002, %v1004, %v1000
    %v1006 = vrcp.pop %v991
    %v1007 = vmul.f32 %v991, %v1006
    %v1008 = vsub.f32 1.0, %v1007
    %v1009 = vmul.f32 %v1006, %v1008
    %v1010 = vadd.f32 %v1006, %v1009
    %vm1011 = vweird.f32 %v991
    %vm1012 = vweird.f32 %v1006
    %vm1013 = vmor %vm1011, %vm1012
    %v1014 = vsel %vm1013, %v1006, %v1010
    %v1015 = vand.u32 2147483647, %v991
    %vm1016 = vcmp.eq.f32.partialorder %v1015, 8.507059e+37
    %v1017 = vand.u32 %v991, 2147483648
    %v1018 = vor.u32 1.1754944e-38, %v1017
    %v1019 = vsel %vm1016, %v1018, %v1014
    %v1020 = vmul.f32 %v983, %v1005
    %v1021 = vmul.f32 %v985, %v1019
    %v1023 = vsel %vm240, %v1020, 0
    %v1026 = vsel %vm240, %v1021, 0
    %1028 = vmatpush.msra.mxu0 0.0
    %1029 = vmatpush.msra.mxu0 0.0
    %1030 = vmatpush.msra.mxu0 0.0
    %1031 = vmatpush.msra.mxu0 0.0
    %1032 = vmatpush.msra.mxu0 0.0
    %1033 = vmatpush.msra.mxu0 0.0
    %1034 = vmatpush.msra.mxu0 0.0
    %1035 = vmatpush.msra.mxu0 0.0
    %1036 = vmatpush.msra.mxu0 0.0
    %1037 = vmatpush.msra.mxu0 0.0
    %1038 = vmatpush.msra.mxu0 0.0
    %1039 = vmatpush.msra.mxu0 0.0
    %1040 = vmatpush.msra.mxu0 0.0
    %1041 = vmatpush.msra.mxu0 0.0
    %1042 = vmatpush.msra.mxu0 %v935
    %1043 = vmatpush.msra.mxu0 %v932
    %1044 = vmatmul.f32.gmra.mxu0 %v1023
    %v1045 = vpop.f32.mrf.mxu0
    %v1046 = vadd.f32 0.0, %v1045
    %1047 = vmatmul.f32.gmra.mxu0 %v1026
    %v1048 = vpop.f32.mrf.mxu0
    %v1049 = vadd.f32 0.0, %v1048
    %1050 = vdwg.mxu0
    %s1051 = scalar_lea.vmem %s7, 24
    %v1052 = vld [vmem:[%s1051] sm:$0xff]
    %v1054 = vsel %vm202, %v1046, 0
    %v1057 = vsel %vm202, %v1049, 0
    %1059 = vmatpush.msra.mxu0 0.0
    %1060 = vmatpush.msra.mxu0 0.0
    %1061 = vmatpush.msra.mxu0 0.0
    %1062 = vmatpush.msra.mxu0 0.0
    %1063 = vmatpush.msra.mxu0 0.0
    %1064 = vmatpush.msra.mxu0 0.0
    %1065 = vmatpush.msra.mxu0 0.0
    %1066 = vmatpush.msra.mxu0 0.0
    %1067 = vmatpush.msra.mxu0 0.0
    %1068 = vmatpush.msra.mxu0 0.0
    %1069 = vmatpush.msra.mxu0 0.0
    %1070 = vmatpush.msra.mxu0 0.0
    %1071 = vmatpush.msra.mxu0 0.0
    %1072 = vmatpush.msra.mxu0 0.0
    %1073 = vmatpush.msra.mxu0 0.0
    %1074 = vmatpush.msra.mxu0 %v1052
    %1075 = vmatmul.f32.gmra.mxu0 %v1054
    %v1076 = vpop.f32.mrf.mxu0
    %v1077 = vadd.f32 0.0, %v1076
    %1078 = vmatmul.f32.gmra.mxu0 %v1057
    %v1079 = vpop.f32.mrf.mxu0
    %v1080 = vadd.f32 0.0, %v1079
    %1081 = vdwg.mxu0
    %v1082 = vadd.f32 %v836, %v1077
    %v1083 = vadd.f32 %v837, %v1080
    %v1084 = vld [vmem:[%s8] sm:$0x1]
    %v1086 = vperm.slane %v1084, 0
    %v1088 = vadd.f32 %v1082, %v1086
    %v1089 = vadd.f32 %v1083, %v1086
    %v1090 = vadd.f32 %v57, %v1088
    %v1091 = vadd.f32 %v58, %v1089
    %v1092 = vld [vmem:[%s13] sm:$0x1]
    %v1093 = vld [vmem:[%s14] sm:$0x1]
    %v1094 = vsel %vm110, %v1090, 0.0
    %1095 = vadd.xlane.f32.xlu0 %v1094
    %v1096 = vpop.xlane.xlu0 %1095
    %v1097 = vsel %vm110, %v1091, 0.0
    %1098 = vadd.xlane.f32.xlu0 %v1097
    %v1099 = vpop.xlane.xlu0 %1098
    %v1100 = vrcp.pop 32.0
    %v1101 = vmul.f32 32.0, %v1100
    %v1102 = vsub.f32 1.0, %v1101
    %v1103 = vmul.f32 %v1100, %v1102
    %v1104 = vadd.f32 %v1100, %v1103
    %vm1105 = vweird.f32 %v1100
    %v1106 = vsel %vm1105, %v1100, %v1104
    %v1107 = vmul.f32 %v1096, %v1106
    %v1108 = vmul.f32 %v1099, %v1106
    %v1109 = vsub.f32 %v1090, %v1107
    %v1110 = vsub.f32 %v1091, %v1108
    %v1111 = vmul.f32 %v1109, %v1109
    %v1112 = vmul.f32 %v1110, %v1110
    %v1113 = vsel %vm110, %v1111, 0.0
    %1114 = vadd.xlane.f32.xlu0 %v1113
    %v1115 = vpop.xlane.xlu0 %1114
    %v1116 = vsel %vm110, %v1112, 0.0
    %1117 = vadd.xlane.f32.xlu0 %v1116
    %v1118 = vpop.xlane.xlu0 %1117
    %v1119 = vmul.f32 %v1115, %v1106
    %v1120 = vmul.f32 %v1118, %v1106
    %v1121 = vadd.f32 %v1119, 1e-05
    %v1122 = vadd.f32 %v1120, 1e-05
    %v1123 = vrsqrt.pop %v1121
    %v1124 = vmul.f32 %v1123, %v1121
    %v1125 = vmul.f32 %v1124, %v1123
    %v1126 = vmul.f32 0.5, %v1125
    %v1127 = vsub.f32 1.5, %v1126
    %v1128 = vmul.f32 %v1123, %v1127
    %vm1129 = vweird.f32 %v1121
    %vm1130 = vweird.f32 %v1123
    %vm1131 = vmor %vm1129, %vm1130
    %v1132 = vsel %vm1131, %v1123, %v1128
    %v1133 = vrsqrt.pop %v1122
    %v1134 = vmul.f32 %v1133, %v1122
    %v1135 = vmul.f32 %v1134, %v1133
    %v1136 = vmul.f32 0.5, %v1135
    %v1137 = vsub.f32 1.5, %v1136
    %v1138 = vmul.f32 %v1133, %v1137
    %vm1139 = vweird.f32 %v1122
    %vm1140 = vweird.f32 %v1133
    %vm1141 = vmor %vm1139, %vm1140
    %v1142 = vsel %vm1141, %v1133, %v1138
    %v1143 = vmul.f32 %v1109, %v1132
    %v1144 = vmul.f32 %v1110, %v1142
    %v1146 = vperm.slane %v1092, 0
    %v1148 = vmul.f32 %v1143, %v1146
    %v1149 = vmul.f32 %v1144, %v1146
    %v1151 = vperm.slane %v1093, 0
    %v1153 = vadd.f32 %v1148, %v1151
    %v1154 = vadd.f32 %v1149, %v1151
    %v1155 = vld [vmem:[%s9] sm:$0xff]
    %v1156 = vld [vmem:[%s9 + $0x8] sm:$0xff]
    %v1157 = vld [vmem:[%s9 + $0x10] sm:$0xff]
    %v1158 = vld [vmem:[%s9 + $0x18] sm:$0xff]
    %v1159 = vld [vmem:[%s10] sm:$0x1]
    %v1161 = vperm.slane %v1159, 0
    %v1164 = vsel %vm110, %v1153, 0
    %v1167 = vsel %vm110, %v1154, 0
    %1169 = vmatpush.msra.mxu0 0.0
    %1170 = vmatpush.msra.mxu0 0.0
    %1171 = vmatpush.msra.mxu0 0.0
    %1172 = vmatpush.msra.mxu0 0.0
    %1173 = vmatpush.msra.mxu0 0.0
    %1174 = vmatpush.msra.mxu0 0.0
    %1175 = vmatpush.msra.mxu0 0.0
    %1176 = vmatpush.msra.mxu0 0.0
    %1177 = vmatpush.msra.mxu0 0.0
    %1178 = vmatpush.msra.mxu0 0.0
    %1179 = vmatpush.msra.mxu0 0.0
    %1180 = vmatpush.msra.mxu0 0.0
    %1181 = vmatpush.msra.mxu0 %v1158
    %1182 = vmatpush.msra.mxu0 %v1157
    %1183 = vmatpush.msra.mxu0 %v1156
    %1184 = vmatpush.msra.mxu0 %v1155
    %1185 = vmatmul.f32.gmra.mxu0 %v1164
    %v1186 = vpop.f32.mrf.mxu0
    %v1187 = vadd.f32 %v1161, %v1186
    %1188 = vmatmul.f32.gmra.mxu0 %v1167
    %v1189 = vpop.f32.mrf.mxu0
    %v1190 = vadd.f32 %v1161, %v1189
    %1191 = vdwg.mxu0
    %v1192 = vmax.f32 %v1187, 0.0
    %v1193 = vmax.f32 %v1190, 0.0
    %v1194 = vld [vmem:[%s11] sm:$0xff]
    %v1195 = vld [vmem:[%s11 + $0x8] sm:$0xff]
    %v1196 = vld [vmem:[%s11 + $0x10] sm:$0xff]
    %v1197 = vld [vmem:[%s11 + $0x18] sm:$0xff]
    %v1198 = vld [vmem:[%s11 + $0x20] sm:$0xff]
    %v1199 = vld [vmem:[%s11 + $0x28] sm:$0xff]
    %v1200 = vld [vmem:[%s11 + $0x30] sm:$0xff]
    %v1201 = vld [vmem:[%s11 + $0x38] sm:$0xff]
    %v1202 = vld [vmem:[%s12] sm:$0x1]
    %v1204 = vperm.slane %v1202, 0
    %vm1206 = vcmask 523264
    %v1208 = vsel %vm1206, %v1192, 0
    %v1211 = vsel %vm1206, %v1193, 0
    %1213 = vmatpush.msra.mxu0 0.0
    %1214 = vmatpush.msra.mxu0 0.0
    %1215 = vmatpush.msra.mxu0 0.0
    %1216 = vmatpush.msra.mxu0 0.0
    %1217 = vmatpush.msra.mxu0 0.0
    %1218 = vmatpush.msra.mxu0 0.0
    %1219 = vmatpush.msra.mxu0 0.0
    %1220 = vmatpush.msra.mxu0 0.0
    %1221 = vmatpush.msra.mxu0 %v1201
    %1222 = vmatpush.msra.mxu0 %v1200
    %1223 = vmatpush.msra.mxu0 %v1199
    %1224 = vmatpush.msra.mxu0 %v1198
    %1225 = vmatpush.msra.mxu0 %v1197
    %1226 = vmatpush.msra.mxu0 %v1196
    %1227 = vmatpush.msra.mxu0 %v1195
    %1228 = vmatpush.msra.mxu0 %v1194
    %1229 = vmatmul.f32.gmra.mxu0 %v1208
    %v1230 = vpop.f32.mrf.mxu0
    %v1231 = vadd.f32 %v1204, %v1230
    %1232 = vmatmul.f32.gmra.mxu0 %v1211
    %v1233 = vpop.f32.mrf.mxu0
    %v1234 = vadd.f32 %v1204, %v1233
    %1235 = vdwg.mxu0
    %v1236 = vadd.f32 %v1153, %v1231
    %v1237 = vadd.f32 %v1154, %v1234
    %v1238 = vld [vmem:[%s15] sm:$0x1]
    %v1239 = vld [vmem:[%s16] sm:$0x1]
    %v1240 = vsel %vm110, %v1236, 0.0
    %1241 = vadd.xlane.f32.xlu0 %v1240
    %v1242 = vpop.xlane.xlu0 %1241
    %v1243 = vsel %vm110, %v1237, 0.0
    %1244 = vadd.xlane.f32.xlu0 %v1243
    %v1245 = vpop.xlane.xlu0 %1244
    %v1246 = vmul.f32 %v1242, %v1106
    %v1247 = vmul.f32 %v1245, %v1106
    %v1248 = vsub.f32 %v1236, %v1246
    %v1249 = vsub.f32 %v1237, %v1247
    %v1250 = vmul.f32 %v1248, %v1248
    %v1251 = vmul.f32 %v1249, %v1249
    %v1252 = vsel %vm110, %v1250, 0.0
    %1253 = vadd.xlane.f32.xlu0 %v1252
    %v1254 = vpop.xlane.xlu0 %1253
    %v1255 = vsel %vm110, %v1251, 0.0
    %1256 = vadd.xlane.f32.xlu0 %v1255
    %v1257 = vpop.xlane.xlu0 %1256
    %v1258 = vmul.f32 %v1254, %v1106
    %v1259 = vmul.f32 %v1257, %v1106
    %v1260 = vadd.f32 %v1258, 1e-05
    %v1261 = vadd.f32 %v1259, 1e-05
    %v1262 = vrsqrt.pop %v1260
    %v1263 = vmul.f32 %v1262, %v1260
    %v1264 = vmul.f32 %v1263, %v1262
    %v1265 = vmul.f32 0.5, %v1264
    %v1266 = vsub.f32 1.5, %v1265
    %v1267 = vmul.f32 %v1262, %v1266
    %vm1268 = vweird.f32 %v1260
    %vm1269 = vweird.f32 %v1262
    %vm1270 = vmor %vm1268, %vm1269
    %v1271 = vsel %vm1270, %v1262, %v1267
    %v1272 = vrsqrt.pop %v1261
    %v1273 = vmul.f32 %v1272, %v1261
    %v1274 = vmul.f32 %v1273, %v1272
    %v1275 = vmul.f32 0.5, %v1274
    %v1276 = vsub.f32 1.5, %v1275
    %v1277 = vmul.f32 %v1272, %v1276
    %vm1278 = vweird.f32 %v1261
    %vm1279 = vweird.f32 %v1272
    %vm1280 = vmor %vm1278, %vm1279
    %v1281 = vsel %vm1280, %v1272, %v1277
    %v1282 = vmul.f32 %v1248, %v1271
    %v1283 = vmul.f32 %v1249, %v1281
    %v1285 = vperm.slane %v1238, 0
    %v1287 = vmul.f32 %v1282, %v1285
    %v1288 = vmul.f32 %v1283, %v1285
    %v1290 = vperm.slane %v1239, 0
    %v1292 = vadd.f32 %v1287, %v1290
    %v1293 = vadd.f32 %v1288, %v1290
    %1294 = vst.msk [vmem:[#allocation2] sm:$0xff] %vm110, %v1292
    %1295 = vst.msk [vmem:[#allocation2 + $0x8] sm:$0xff] %vm110, %v1293
    // Predicated region
    $region70: #{tpu_custom_call.1} parent=1 // pred_check
      _
    $region71: #{tpu_custom_call.1} parent=1 // pred_check_branch
      %1297 = sbr.rel (0) target = $region73
    $region72: #{tpu_custom_call.1} parent=1 // pred_region
      %1299 = vsyncadd [#allocation3], 0
      %s1300 = sshll.u32 [#allocation2], 4
      %s1301 = int_to_ptr.vmem [resolvable:$true] %s1300
      %s1302 = sshll.u32 %s17, 4
      %s1303 = int_to_ptr.hbm [resolvable:$true] %s1302
      %1308 = dma.vmem_to_hbm [thread:$0]  %s1301, 256, %s1303, [#allocation3], 128, 128, 8
    $region73: #{tpu_custom_call.1} parent=1 // pred_fallthru
      _
    // Predicated region
    $region74: #{tpu_custom_call.1} parent=1 // pred_check
      _
    $region75: #{tpu_custom_call.1} parent=1 // pred_check_branch
      %1310 = sbr.rel (0) target = $region77
    $region76: #{tpu_custom_call.1} parent=1 // pred_region
      %1312 = dma.done [#allocation3], 256
    $region77: #{tpu_custom_call.1} parent=1 // pred_fallthru
      _
    %1313 = vsyncpa [#allocation3], 1

</llo_original>
